<compile_context>
chip_gen: v5e
topology: v5e:2x2
jax: 0.10.0
libtpu: 0.0.40
codegen_flags: <defaults>
</compile_context>

<pallas_src>
from functools import partial

import jax
import jax.numpy as jnp
from jax.experimental import pallas as pl
from jax.experimental.pallas import tpu as pltpu


def _round_up(a, b):
    return ((a + b - 1) // b) * b


# --------------------------- feat encoder: h = relu(x @ W1 + b1) ----------------
def _encoder_kernel(x_ref, w1_ref, b1_ref, h_ref):
    h = jnp.dot(x_ref[...], w1_ref[...], preferred_element_type=jnp.float32)
    h_ref[...] = jnp.maximum(h + b1_ref[...], 0.0)


# --------------------------- one FALayer, tiled over (dst, src) blocks ----------
def _falayer_kernel(occ_ref, adj_ref, hd_ref, hs_ref, raw_ref, dd_ref, ds_ref,
                    gwd_ref, gws_ref, gb_ref, out_ref, acc_ref, *, eps):
    i = pl.program_id(0)          # dst block (parallel)
    j = pl.program_id(1)          # src block (reduction, innermost)
    nj = pl.num_programs(1)

    @pl.when(j == 0)
    def _():
        acc_ref[...] = jnp.zeros_like(acc_ref)

    # Skip tiles with no edges: the dense tanh over the tile is the EUP roofline,
    # so empty tiles (most of them for sparse graphs) cost nothing.
    @pl.when(occ_ref[i * nj + j] > 0)
    def _():
        h_dst = hd_ref[...]                                   # (TM, H)
        h_src = hs_ref[...]                                   # (TS, H)
        a_dst = jnp.sum(h_dst * gwd_ref[...], axis=-1, keepdims=True)   # (TM, 1)
        a_src = jnp.sum(h_src * gws_ref[...], axis=-1, keepdims=True)   # (TS, 1)
        g = jnp.tanh(a_dst + a_src.T + gb_ref[0])             # (TM, TS)
        e = g * adj_ref[...]                                  # mask on existing edges
        # degree of the src side folded into the feature matrix (no dd matrix)
        acc_ref[...] += jnp.dot(e, ds_ref[...] * h_src,
                                preferred_element_type=jnp.float32)

    @pl.when(j == nj - 1)
    def _():
        # dst-side degree scaling + residual, written once per dst block
        out_ref[...] = eps * raw_ref[...] + dd_ref[...] * acc_ref[...]


# --------------------------- final encoder (lane-dense padded classes) ----------
def _final_kernel(h_ref, w2_ref, b2_ref, o_ref):
    o_ref[...] = (jnp.dot(h_ref[...], w2_ref[...], preferred_element_type=jnp.float32)
                  + b2_ref[...])


@partial(jax.jit, static_argnames=("eps", "num_layers", "block"))
def fagcn_forward(x, adj, params, *, eps, num_layers, block=512):
    n, f = x.shape
    h_dim = params["w1"].shape[1]
    c = params["w2"].shape[1]

    # tile size: multiple of 128, clamped for small graphs
    tile = min(block, _round_up(n, 128))
    n_pad = _round_up(n, tile)
    nb = n_pad // tile
    c_pad = _round_up(c, 128)

    x_p = jnp.pad(x, ((0, n_pad - n), (0, 0)))
    adj_p = jnp.pad(adj, ((0, n_pad - n), (0, n_pad - n)))

    # d = in_degree^{-1/2} (clamped at 1), precomputed once (N-vector input).
    deg = jnp.maximum(jnp.sum(adj_p, axis=-1, keepdims=True), 1.0)
    d = jax.lax.rsqrt(deg)                                    # (n_pad, 1)

    # per-(dst_block, src_block) occupancy table, scalar-prefetched into SMEM
    occ = (adj_p.reshape(nb, tile, nb, tile).sum(axis=(1, 3)) > 0.0)
    occ = occ.astype(jnp.int32).reshape(-1)                   # (nb*nb,)

    cparams_1d = pltpu.CompilerParams(dimension_semantics=("parallel",))
    cparams_2d = pltpu.CompilerParams(dimension_semantics=("parallel", "arbitrary"))

    # ---- feature encoder ----
    h = pl.pallas_call(
        _encoder_kernel,
        grid=(nb,),
        in_specs=[pl.BlockSpec((tile, f), lambda i: (i, 0)),
                  pl.BlockSpec((f, h_dim), lambda i: (0, 0)),
                  pl.BlockSpec((1, h_dim), lambda i: (0, 0))],
        out_specs=pl.BlockSpec((tile, h_dim), lambda i: (i, 0)),
        out_shape=jax.ShapeDtypeStruct((n_pad, h_dim), jnp.float32),
        compiler_params=cparams_1d,
    )(x_p, params["w1"], params["b1"])
    raw = h

    # ---- FALayers ----
    for layer in range(num_layers):
        gwd_l = params["gwd"][layer:layer + 1, :]             # (1, H)
        gws_l = params["gws"][layer:layer + 1, :]             # (1, H)
        gb_l = params["gb"][layer]                            # (1,)  -> SMEM scalar

        grid_spec = pltpu.PrefetchScalarGridSpec(
            num_scalar_prefetch=1,
            grid=(nb, nb),
            in_specs=[
                pl.BlockSpec((tile, tile), lambda i, j, occ_r: (i, j)),   # adj tile
                pl.BlockSpec((tile, h_dim), lambda i, j, occ_r: (i, 0)),  # h (dst rows)
                pl.BlockSpec((tile, h_dim), lambda i, j, occ_r: (j, 0)),  # h (src rows)
                pl.BlockSpec((tile, h_dim), lambda i, j, occ_r: (i, 0)),  # raw (dst rows)
                pl.BlockSpec((tile, 1), lambda i, j, occ_r: (i, 0)),      # d (dst)
                pl.BlockSpec((tile, 1), lambda i, j, occ_r: (j, 0)),      # d (src)
                pl.BlockSpec((1, h_dim), lambda i, j, occ_r: (0, 0)),     # gate w (dst half)
                pl.BlockSpec((1, h_dim), lambda i, j, occ_r: (0, 0)),     # gate w (src half)
                pl.BlockSpec(memory_space=pltpu.MemorySpace.SMEM),        # gate bias scalar
            ],
            out_specs=pl.BlockSpec((tile, h_dim), lambda i, j, occ_r: (i, 0)),
            scratch_shapes=[pltpu.VMEM((tile, h_dim), jnp.float32)],
        )
        h = pl.pallas_call(
            partial(_falayer_kernel, eps=eps),
            grid_spec=grid_spec,
            out_shape=jax.ShapeDtypeStruct((n_pad, h_dim), jnp.float32),
            compiler_params=cparams_2d,
        )(occ, adj_p, h, h, raw, d, d, gwd_l, gws_l, gb_l)

    # ---- final encoder: pad classes to a lane-dense 128-wide output, slice outside
    w2_p = jnp.pad(params["w2"], ((0, 0), (0, c_pad - c)))
    b2_p = jnp.pad(params["b2"], ((0, 0), (0, c_pad - c)))
    out = pl.pallas_call(
        _final_kernel,
        grid=(nb,),
        in_specs=[pl.BlockSpec((tile, h_dim), lambda i: (i, 0)),
                  pl.BlockSpec((h_dim, c_pad), lambda i: (0, 0)),
                  pl.BlockSpec((1, c_pad), lambda i: (0, 0))],
        out_specs=pl.BlockSpec((tile, c_pad), lambda i: (i, 0)),
        out_shape=jax.ShapeDtypeStruct((n_pad, c_pad), jnp.float32),
        compiler_params=cparams_1d,
    )(h, w2_p, b2_p)

    return out[:n, :c]


def fagcn_reference(x, adj, params, *, eps, num_layers):
    """Pure-JAX reference matching the PyTorch forward (inference)."""
    deg = jnp.maximum(adj.sum(-1, keepdims=True), 1.0)
    d = 1.0 / jnp.sqrt(deg)
    dd = (d * d.T) * adj
    h = jax.nn.relu(x @ params["w1"] + params["b1"])
    raw = h
    for i in range(num_layers):
        a_dst = h @ params["gwd"][i]
        a_src = h @ params["gws"][i]
        g = jnp.tanh(a_dst[:, None] + a_src[None, :] + params["gb"][i, 0])
        z = (g * dd) @ h
        h = eps * raw + z
    return h @ params["w2"] + params["b2"]


if __name__ == "__main__":
    # small, deterministic shapes
    N, F, H, C = 128, 32, 32, 8          # nodes, num_features, hidden_dim, num_classes
    NUM_LAYERS = 2
    EPS = 0.3

    key = jax.random.PRNGKey(0)
    k_x, k_adj, k_w1, k_b1, k_gw, k_gb, k_w2, k_b2 = jax.random.split(key, 8)

    # node features
    x = jax.random.normal(k_x, (N, F), dtype=jnp.float32)

    # synthetic directed graph: dense adjacency, no self loops
    adj = jax.random.bernoulli(k_adj, p=0.05, shape=(N, N)).astype(jnp.float32)
    adj = adj * (1.0 - jnp.eye(N, dtype=jnp.float32))

    # deterministic synthetic parameters (shapes per FAGCN.__init__)
    params = {
        "w1": 0.1 * jax.random.normal(k_w1, (F, H), dtype=jnp.float32),      # feat_encoder
        "b1": 0.1 * jax.random.normal(k_b1, (1, H), dtype=jnp.float32),
        # gate Linear(2*H, 1) per layer, split into dst / src halves
        "gwd": 0.1 * jax.random.normal(k_gw, (NUM_LAYERS, H), dtype=jnp.float32),
        "gws": 0.1 * jax.random.normal(jax.random.fold_in(k_gw, 1),
                                       (NUM_LAYERS, H), dtype=jnp.float32),
        "gb": 0.1 * jax.random.normal(k_gb, (NUM_LAYERS, 1), dtype=jnp.float32),
        "w2": 0.1 * jax.random.normal(k_w2, (H, C), dtype=jnp.float32),      # final_encoder
        "b2": 0.1 * jax.random.normal(k_b2, (1, C), dtype=jnp.float32),
    }

    out = fagcn_forward(x, adj, params, eps=EPS, num_layers=NUM_LAYERS)
    out = jax.block_until_ready(out)

    ref = fagcn_reference(x, adj, params, eps=EPS, num_layers=NUM_LAYERS)
    assert out.shape == (N, C), out.shape
    assert jnp.allclose(out, ref, atol=1e-4, rtol=1e-4), \
        float(jnp.max(jnp.abs(out - ref)))

    print("KERNEL_OK")
</pallas_src>

<mosaic_0001>
module attributes {stable_mosaic.version = 11 : i64} {
  func.func @_final_kernel(%arg0: i32, %arg1: memref<128x32xf32, #tpu.memory_space<vmem>>, %arg2: memref<32x128xf32, #tpu.memory_space<vmem>>, %arg3: memref<1x128xf32, #tpu.memory_space<vmem>>, %arg4: memref<128x128xf32, #tpu.memory_space<vmem>>) attributes {dimension_semantics = [#tpu.dimension_semantics<parallel>], iteration_bounds = array<i64: 1>, scalar_prefetch = 0 : i64, scratch_operands = 0 : i64, tpu.core_type = #tpu.core_type<tc>, window_params = [{transform_indices = @transform_0, window_bounds = array<i64: 128, 32>}, {pipeline_mode = #tpu.pipeline_mode<synchronous>, transform_indices = @transform_1, window_bounds = array<i64: 32, 128>}, {pipeline_mode = #tpu.pipeline_mode<synchronous>, transform_indices = @transform_2, window_bounds = array<i64: 1, 128>}, {transform_indices = @transform_3, window_bounds = array<i64: 128, 128>}]} {
    %c0 = arith.constant 0 : index
    %c0_0 = arith.constant 0 : index
    %0 = vector.load %arg1[%c0, %c0_0] : memref<128x32xf32, #tpu.memory_space<vmem>>, vector<128x32xf32>
    %c0_1 = arith.constant 0 : index
    %c0_2 = arith.constant 0 : index
    %1 = vector.load %arg2[%c0_1, %c0_2] : memref<32x128xf32, #tpu.memory_space<vmem>>, vector<32x128xf32>
    %cst = arith.constant dense<0.000000e+00> : vector<128x128xf32>
    %2 = tpu.matmul %0, %1, %cst {dimension_numbers = #tpu.dot_dimension_numbers<[1], [0], [0], [1], [0, 0, 1, 1], [], []>} : vector<128x32xf32>, vector<32x128xf32>, vector<128x128xf32> -> vector<128x128xf32>
    %c0_3 = arith.constant 0 : index
    %c0_4 = arith.constant 0 : index
    %3 = vector.load %arg3[%c0_3, %c0_4] : memref<1x128xf32, #tpu.memory_space<vmem>>, vector<1x128xf32>
    %4 = vector.broadcast %3 : vector<1x128xf32> to vector<128x128xf32>
    %5 = arith.addf %2, %4 : vector<128x128xf32>
    %c0_5 = arith.constant 0 : index
    %c0_6 = arith.constant 0 : index
    %6 = vector.load %arg4[%c0_5, %c0_6] : memref<128x128xf32, #tpu.memory_space<vmem>>, vector<128x128xf32>
    tpu.vector_store %arg4[%c0_5, %c0_6], %5 {strides = array<i32>} : memref<128x128xf32, #tpu.memory_space<vmem>>, vector<128x128xf32>,
    return
  }
  func.func @transform_0(%arg0: i32) -> (i32, i32) {
    %c0_i32 = arith.constant 0 : i32
    %c0_i32_0 = arith.constant 0 : i32
    return %arg0, %c0_i32 : i32, i32
  }
  func.func @transform_1(%arg0: i32) -> (i32, i32) {
    %c0_i32 = arith.constant 0 : i32
    %c0_i32_0 = arith.constant 0 : i32
    %c0_i32_1 = arith.constant 0 : i32
    return %c0_i32, %c0_i32_0 : i32, i32
  }
  func.func @transform_2(%arg0: i32) -> (i32, i32) {
    %c0_i32 = arith.constant 0 : i32
    %c0_i32_0 = arith.constant 0 : i32
    %c0_i32_1 = arith.constant 0 : i32
    return %c0_i32, %c0_i32_0 : i32, i32
  }
  func.func @transform_3(%arg0: i32) -> (i32, i32) {
    %c0_i32 = arith.constant 0 : i32
    %c0_i32_0 = arith.constant 0 : i32
    return %arg0, %c0_i32 : i32, i32
  }
}

module attributes {stable_mosaic.version = 11 : i64} {
  func.func @_encoder_kernel(%arg0: i32, %arg1: memref<128x32xf32, #tpu.memory_space<vmem>>, %arg2: memref<32x32xf32, #tpu.memory_space<vmem>>, %arg3: memref<1x32xf32, #tpu.memory_space<vmem>>, %arg4: memref<128x32xf32, #tpu.memory_space<vmem>>) attributes {dimension_semantics = [#tpu.dimension_semantics<parallel>], iteration_bounds = array<i64: 1>, scalar_prefetch = 0 : i64, scratch_operands = 0 : i64, tpu.core_type = #tpu.core_type<tc>, window_params = [{transform_indices = @transform_0, window_bounds = array<i64: 128, 32>}, {pipeline_mode = #tpu.pipeline_mode<synchronous>, transform_indices = @transform_1, window_bounds = array<i64: 32, 32>}, {pipeline_mode = #tpu.pipeline_mode<synchronous>, transform_indices = @transform_2, window_bounds = array<i64: 1, 32>}, {transform_indices = @transform_3, window_bounds = array<i64: 128, 32>}]} {
    %c0 = arith.constant 0 : index
    %c0_0 = arith.constant 0 : index
    %0 = vector.load %arg1[%c0, %c0_0] : memref<128x32xf32, #tpu.memory_space<vmem>>, vector<128x32xf32>
    %c0_1 = arith.constant 0 : index
    %c0_2 = arith.constant 0 : index
    %1 = vector.load %arg2[%c0_1, %c0_2] : memref<32x32xf32, #tpu.memory_space<vmem>>, vector<32x32xf32>
    %cst = arith.constant dense<0.000000e+00> : vector<128x32xf32>
    %2 = tpu.matmul %0, %1, %cst {dimension_numbers = #tpu.dot_dimension_numbers<[1], [0], [0], [1], [0, 0, 1, 1], [], []>} : vector<128x32xf32>, vector<32x32xf32>, vector<128x32xf32> -> vector<128x32xf32>
    %c0_3 = arith.constant 0 : index
    %c0_4 = arith.constant 0 : index
    %3 = vector.load %arg3[%c0_3, %c0_4] : memref<1x32xf32, #tpu.memory_space<vmem>>, vector<1x32xf32>
    %4 = vector.broadcast %3 : vector<1x32xf32> to vector<128x32xf32>
    %5 = arith.addf %2, %4 : vector<128x32xf32>
    %cst_5 = arith.constant 0.000000e+00 : f32
    %6 = vector.broadcast %cst_5 : f32 to vector<128x32xf32>
    %7 = arith.maximumf %5, %6 : vector<128x32xf32>
    %c0_6 = arith.constant 0 : index
    %c0_7 = arith.constant 0 : index
    %8 = vector.load %arg4[%c0_6, %c0_7] : memref<128x32xf32, #tpu.memory_space<vmem>>, vector<128x32xf32>
    tpu.vector_store %arg4[%c0_6, %c0_7], %7 {strides = array<i32>} : memref<128x32xf32, #tpu.memory_space<vmem>>, vector<128x32xf32>,
    return
  }
  func.func @transform_0(%arg0: i32) -> (i32, i32) {
    %c0_i32 = arith.constant 0 : i32
    %c0_i32_0 = arith.constant 0 : i32
    return %arg0, %c0_i32 : i32, i32
  }
  func.func @transform_1(%arg0: i32) -> (i32, i32) {
    %c0_i32 = arith.constant 0 : i32
    %c0_i32_0 = arith.constant 0 : i32
    %c0_i32_1 = arith.constant 0 : i32
    return %c0_i32, %c0_i32_0 : i32, i32
  }
  func.func @transform_2(%arg0: i32) -> (i32, i32) {
    %c0_i32 = arith.constant 0 : i32
    %c0_i32_0 = arith.constant 0 : i32
    %c0_i32_1 = arith.constant 0 : i32
    return %c0_i32, %c0_i32_0 : i32, i32
  }
  func.func @transform_3(%arg0: i32) -> (i32, i32) {
    %c0_i32 = arith.constant 0 : i32
    %c0_i32_0 = arith.constant 0 : i32
    return %arg0, %c0_i32 : i32, i32
  }
}

module attributes {stable_mosaic.version = 11 : i64} {
  func.func @_falayer_kernel(%arg0: i32, %arg1: i32, %arg2: memref<1xi32, #tpu.memory_space<smem>>, %arg3: memref<128x128xf32, #tpu.memory_space<vmem>>, %arg4: memref<128x32xf32, #tpu.memory_space<vmem>>, %arg5: memref<128x32xf32, #tpu.memory_space<vmem>>, %arg6: memref<128x32xf32, #tpu.memory_space<vmem>>, %arg7: memref<128x1xf32, #tpu.memory_space<vmem>>, %arg8: memref<128x1xf32, #tpu.memory_space<vmem>>, %arg9: memref<1x32xf32, #tpu.memory_space<vmem>>, %arg10: memref<1x32xf32, #tpu.memory_space<vmem>>, %arg11: memref<1xf32, #tpu.memory_space<smem>>, %arg12: memref<128x32xf32, #tpu.memory_space<vmem>>, %arg13: memref<128x32xf32, #tpu.memory_space<vmem>>) attributes {dimension_semantics = [#tpu.dimension_semantics<parallel>, #tpu.dimension_semantics<arbitrary>], iteration_bounds = array<i64: 1, 1>, scalar_prefetch = 1 : i64, scratch_operands = 1 : i64, tpu.core_type = #tpu.core_type<tc>, window_params = [{transform_indices = @transform_0, window_bounds = array<i64: 128, 128>}, {transform_indices = @transform_1, window_bounds = array<i64: 128, 32>}, {transform_indices = @transform_2, window_bounds = array<i64: 128, 32>}, {transform_indices = @transform_3, window_bounds = array<i64: 128, 32>}, {transform_indices = @transform_4, window_bounds = array<i64: 128, 1>}, {transform_indices = @transform_5, window_bounds = array<i64: 128, 1>}, {pipeline_mode = #tpu.pipeline_mode<synchronous>, transform_indices = @transform_6, window_bounds = array<i64: 1, 32>}, {pipeline_mode = #tpu.pipeline_mode<synchronous>, transform_indices = @transform_7, window_bounds = array<i64: 1, 32>}, {transform_indices = @transform_8, window_bounds = array<i64: 1>}, {transform_indices = @transform_9, window_bounds = array<i64: 128, 32>}]} {
    %c0_i32 = arith.constant 0 : i32
    %0 = arith.cmpi eq, %arg1, %c0_i32 : i32
    %1 = arith.extui %0 : i1 to i32
    %c0_i32_0 = arith.constant 0 : i32
    %2 = arith.cmpi ne, %1, %c0_i32_0 : i32
    scf.if %2 {
      %cst = arith.constant 0.000000e+00 : f32
      %13 = vector.broadcast %cst : f32 to vector<128x32xf32>
      %c0 = arith.constant 0 : index
      %c0_5 = arith.constant 0 : index
      %14 = vector.load %arg13[%c0, %c0_5] : memref<128x32xf32, #tpu.memory_space<vmem>>, vector<128x32xf32>
      tpu.vector_store %arg13[%c0, %c0_5], %13 {strides = array<i32>} : memref<128x32xf32, #tpu.memory_space<vmem>>, vector<128x32xf32>,
    } else {
    }
    %c1_i32 = arith.constant 1 : i32
    %3 = arith.muli %arg0, %c1_i32 : i32
    %4 = arith.addi %3, %arg1 : i32
    %5 = arith.index_cast %4 : i32 to index
    %6 = memref.load %arg2[%5] : memref<1xi32, #tpu.memory_space<smem>>
    %c0_i32_1 = arith.constant 0 : i32
    %7 = arith.cmpi sgt, %6, %c0_i32_1 : i32
    %8 = arith.extui %7 : i1 to i32
    %c0_i32_2 = arith.constant 0 : i32
    %9 = arith.cmpi ne, %8, %c0_i32_2 : i32
    scf.if %9 {
      %c0 = arith.constant 0 : index
      %c0_5 = arith.constant 0 : index
      %13 = vector.load %arg4[%c0, %c0_5] : memref<128x32xf32, #tpu.memory_space<vmem>>, vector<128x32xf32>
      %c0_6 = arith.constant 0 : index
      %c0_7 = arith.constant 0 : index
      %14 = vector.load %arg5[%c0_6, %c0_7] : memref<128x32xf32, #tpu.memory_space<vmem>>, vector<128x32xf32>
      %c0_8 = arith.constant 0 : index
      %c0_9 = arith.constant 0 : index
      %15 = vector.load %arg9[%c0_8, %c0_9] : memref<1x32xf32, #tpu.memory_space<vmem>>, vector<1x32xf32>
      %16 = vector.broadcast %15 : vector<1x32xf32> to vector<128x32xf32>
      %17 = arith.mulf %13, %16 : vector<128x32xf32>
      %cst = arith.constant dense<0.000000e+00> : vector<128xf32>
      %18 = vector.multi_reduction <add>, %17, %cst [1] : vector<128x32xf32> to vector<128xf32>
      %19 = vector.shape_cast %18 : vector<128xf32> to vector<128x1xf32>
      %c0_10 = arith.constant 0 : index
      %c0_11 = arith.constant 0 : index
      %20 = vector.load %arg10[%c0_10, %c0_11] : memref<1x32xf32, #tpu.memory_space<vmem>>, vector<1x32xf32>
      %21 = vector.broadcast %20 : vector<1x32xf32> to vector<128x32xf32>
      %22 = arith.mulf %14, %21 : vector<128x32xf32>
      %cst_12 = arith.constant dense<0.000000e+00> : vector<128xf32>
      %23 = vector.multi_reduction <add>, %22, %cst_12 [1] : vector<128x32xf32> to vector<128xf32>
      %24 = vector.shape_cast %23 : vector<128xf32> to vector<128x1xf32>
      %25 = tpu.transpose %24, [1, 0] : vector<128x1xf32> -> vector<1x128xf32>
      %26 = vector.broadcast %19 : vector<128x1xf32> to vector<128x128xf32>
      %27 = vector.broadcast %25 : vector<1x128xf32> to vector<128x128xf32>
      %28 = arith.addf %26, %27 : vector<128x128xf32>
      %c0_13 = arith.constant 0 : index
      %29 = memref.load %arg11[%c0_13] : memref<1xf32, #tpu.memory_space<smem>>
      %30 = vector.broadcast %29 : f32 to vector<128x128xf32>
      %31 = arith.addf %28, %30 : vector<128x128xf32>
      %32 = math.tanh %31 : vector<128x128xf32>
      %c0_14 = arith.constant 0 : index
      %c0_15 = arith.constant 0 : index
      %33 = vector.load %arg3[%c0_14, %c0_15] : memref<128x128xf32, #tpu.memory_space<vmem>>, vector<128x128xf32>
      %34 = arith.mulf %32, %33 : vector<128x128xf32>
      %c0_16 = arith.constant 0 : index
      %c0_17 = arith.constant 0 : index
      %35 = vector.load %arg13[%c0_16, %c0_17] : memref<128x32xf32, #tpu.memory_space<vmem>>, vector<128x32xf32>
      %c0_18 = arith.constant 0 : index
      %c0_19 = arith.constant 0 : index
      %36 = vector.load %arg8[%c0_18, %c0_19] : memref<128x1xf32, #tpu.memory_space<vmem>>, vector<128x1xf32>
      %37 = vector.broadcast %36 : vector<128x1xf32> to vector<128x32xf32>
      %38 = arith.mulf %37, %14 : vector<128x32xf32>
      %cst_20 = arith.constant dense<0.000000e+00> : vector<128x32xf32>
      %39 = tpu.matmul %34, %38, %cst_20 {dimension_numbers = #tpu.dot_dimension_numbers<[1], [0], [0], [1], [0, 0, 1, 1], [], []>} : vector<128x128xf32>, vector<128x32xf32>, vector<128x32xf32> -> vector<128x32xf32>
      %40 = arith.addf %35, %39 : vector<128x32xf32>
      %c0_21 = arith.constant 0 : index
      %c0_22 = arith.constant 0 : index
      %41 = vector.load %arg13[%c0_21, %c0_22] : memref<128x32xf32, #tpu.memory_space<vmem>>, vector<128x32xf32>
      tpu.vector_store %arg13[%c0_21, %c0_22], %40 {strides = array<i32>} : memref<128x32xf32, #tpu.memory_space<vmem>>, vector<128x32xf32>,
    } else {
    }
    %c0_i32_3 = arith.constant 0 : i32
    %10 = arith.cmpi eq, %arg1, %c0_i32_3 : i32
    %11 = arith.extui %10 : i1 to i32
    %c0_i32_4 = arith.constant 0 : i32
    %12 = arith.cmpi ne, %11, %c0_i32_4 : i32
    scf.if %12 {
      %c0 = arith.constant 0 : index
      %c0_5 = arith.constant 0 : index
      %13 = vector.load %arg6[%c0, %c0_5] : memref<128x32xf32, #tpu.memory_space<vmem>>, vector<128x32xf32>
      %cst = arith.constant 3.000000e-01 : f32
      %14 = vector.broadcast %cst : f32 to vector<128x32xf32>
      %15 = arith.mulf %14, %13 : vector<128x32xf32>
      %c0_6 = arith.constant 0 : index
      %c0_7 = arith.constant 0 : index
      %16 = vector.load %arg7[%c0_6, %c0_7] : memref<128x1xf32, #tpu.memory_space<vmem>>, vector<128x1xf32>
      %c0_8 = arith.constant 0 : index
      %c0_9 = arith.constant 0 : index
      %17 = vector.load %arg13[%c0_8, %c0_9] : memref<128x32xf32, #tpu.memory_space<vmem>>, vector<128x32xf32>
      %18 = vector.broadcast %16 : vector<128x1xf32> to vector<128x32xf32>
      %19 = arith.mulf %18, %17 : vector<128x32xf32>
      %20 = arith.addf %15, %19 : vector<128x32xf32>
      %c0_10 = arith.constant 0 : index
      %c0_11 = arith.constant 0 : index
      %21 = vector.load %arg12[%c0_10, %c0_11] : memref<128x32xf32, #tpu.memory_space<vmem>>, vector<128x32xf32>
      tpu.vector_store %arg12[%c0_10, %c0_11], %20 {strides = array<i32>} : memref<128x32xf32, #tpu.memory_space<vmem>>, vector<128x32xf32>,
    } else {
    }
    return
  }
  func.func @transform_0(%arg0: i32, %arg1: i32, %arg2: memref<1xi32, #tpu.memory_space<smem>>) -> (i32, i32) {
    %c0_i32 = arith.constant 0 : i32
    return %arg0, %arg1 : i32, i32
  }
  func.func @transform_1(%arg0: i32, %arg1: i32, %arg2: memref<1xi32, #tpu.memory_space<smem>>) -> (i32, i32) {
    %c0_i32 = arith.constant 0 : i32
    %c0_i32_0 = arith.constant 0 : i32
    return %arg0, %c0_i32 : i32, i32
  }
  func.func @transform_2(%arg0: i32, %arg1: i32, %arg2: memref<1xi32, #tpu.memory_space<smem>>) -> (i32, i32) {
    %c0_i32 = arith.constant 0 : i32
    %c0_i32_0 = arith.constant 0 : i32
    return %arg1, %c0_i32 : i32, i32
  }
  func.func @transform_3(%arg0: i32, %arg1: i32, %arg2: memref<1xi32, #tpu.memory_space<smem>>) -> (i32, i32) {
    %c0_i32 = arith.constant 0 : i32
    %c0_i32_0 = arith.constant 0 : i32
    return %arg0, %c0_i32 : i32, i32
  }
  func.func @transform_4(%arg0: i32, %arg1: i32, %arg2: memref<1xi32, #tpu.memory_space<smem>>) -> (i32, i32) {
    %c0_i32 = arith.constant 0 : i32
    %c0_i32_0 = arith.constant 0 : i32
    return %arg0, %c0_i32 : i32, i32
  }
  func.func @transform_5(%arg0: i32, %arg1: i32, %arg2: memref<1xi32, #tpu.memory_space<smem>>) -> (i32, i32) {
    %c0_i32 = arith.constant 0 : i32
    %c0_i32_0 = arith.constant 0 : i32
    return %arg1, %c0_i32 : i32, i32
  }
  func.func @transform_6(%arg0: i32, %arg1: i32, %arg2: memref<1xi32, #tpu.memory_space<smem>>) -> (i32, i32) {
    %c0_i32 = arith.constant 0 : i32
    %c0_i32_0 = arith.constant 0 : i32
    %c0_i32_1 = arith.constant 0 : i32
    return %c0_i32, %c0_i32_0 : i32, i32
  }
  func.func @transform_7(%arg0: i32, %arg1: i32, %arg2: memref<1xi32, #tpu.memory_space<smem>>) -> (i32, i32) {
    %c0_i32 = arith.constant 0 : i32
    %c0_i32_0 = arith.constant 0 : i32
    %c0_i32_1 = arith.constant 0 : i32
    return %c0_i32, %c0_i32_0 : i32, i32
  }
  func.func @transform_8(%arg0: i32, %arg1: i32, %arg2: memref<1xi32, #tpu.memory_space<smem>>) -> i32 {
    %c0_i32 = arith.constant 0 : i32
    %c0_i32_0 = arith.constant 0 : i32
    return %c0_i32 : i32
  }
  func.func @transform_9(%arg0: i32, %arg1: i32, %arg2: memref<1xi32, #tpu.memory_space<smem>>) -> (i32, i32) {
    %c0_i32 = arith.constant 0 : i32
    %c0_i32_0 = arith.constant 0 : i32
    return %arg0, %c0_i32 : i32, i32
  }
}

</mosaic_0001>

<llo_original>
// kernel: fagcn_forward.4
$region0: #{fagcn_forward.4}
  #allocation0 [shape = 'u32[]', space=smem, size = 0x4, offset = 0x4, fixed_abs, tag = 'smem constant byte address 0x4 - core index']
  #allocation1 [shape = 'u32[72,128]{1,0:T(1,128)}', space=vmem, size = 0x9000, scoped, tag = 'internal scratch']
  %s0 = inlined_call_operand.vmem [shape: f32[128,32], index: 0, kind: input, shape index: {}]
  %s1 = inlined_call_operand.vmem [shape: f32[32,32], index: 1, kind: input, shape index: {}]
  %s2 = inlined_call_operand.vmem [shape: f32[1,32], index: 2, kind: input, shape index: {}]
  %s3 = inlined_call_operand.vmem [shape: f32[128,32], index: 3, kind: output, shape index: {}]
  %s4 = sld [smem:[#allocation0]]
  $region22: #{fagcn_forward.4} parent=0
    _
  %s6 = ssub.s32 1, %s4
  %s7 = scalar_select 0, %s6, %s4
  // Predicated region
  $region2: #{fagcn_forward.4} parent=0 // pred_check
    _
  $region3: #{fagcn_forward.4} parent=0 // pred_check_branch
    %9 = sbr.rel (0) target = $region5
  $region4: #{fagcn_forward.4} parent=0 // pred_region
    _
  $region5: #{fagcn_forward.4} parent=0 // pred_fallthru
    _
  // Predicated region
  $region6: #{fagcn_forward.4} parent=0 // pred_check
    _
  $region7: #{fagcn_forward.4} parent=0 // pred_check_branch
    %11 = sbr.rel (0) target = $region9
  $region8: #{fagcn_forward.4} parent=0 // pred_region
    _
  $region9: #{fagcn_forward.4} parent=0 // pred_fallthru
    _
  // Predicated region
  $region10: #{fagcn_forward.4} parent=0 // pred_check
    _
  $region11: #{fagcn_forward.4} parent=0 // pred_check_branch
    %13 = sbr.rel (0) target = $region13
  $region12: #{fagcn_forward.4} parent=0 // pred_region
    _
  $region13: #{fagcn_forward.4} parent=0 // pred_fallthru
    _
  %v14 = vld [vmem:[%s0] sm:$0xff]
  %v15 = vld [vmem:[%s0 + $0x8] sm:$0xff]
  %v16 = vld [vmem:[%s0 + $0x10] sm:$0xff]
  %v17 = vld [vmem:[%s0 + $0x18] sm:$0xff]
  %v18 = vld [vmem:[%s0 + $0x20] sm:$0xff]
  %v19 = vld [vmem:[%s0 + $0x28] sm:$0xff]
  %v20 = vld [vmem:[%s0 + $0x30] sm:$0xff]
  %v21 = vld [vmem:[%s0 + $0x38] sm:$0xff]
  %v22 = vld [vmem:[%s0 + $0x40] sm:$0xff]
  %v23 = vld [vmem:[%s0 + $0x48] sm:$0xff]
  %v24 = vld [vmem:[%s0 + $0x50] sm:$0xff]
  %v25 = vld [vmem:[%s0 + $0x58] sm:$0xff]
  %v26 = vld [vmem:[%s0 + $0x60] sm:$0xff]
  %v27 = vld [vmem:[%s0 + $0x68] sm:$0xff]
  %v28 = vld [vmem:[%s0 + $0x70] sm:$0xff]
  %v29 = vld [vmem:[%s0 + $0x78] sm:$0xff]
  %v30 = vld [vmem:[%s1] sm:$0xff]
  %v31 = vld [vmem:[%s1 + $0x8] sm:$0xff]
  %v32 = vld [vmem:[%s1 + $0x10] sm:$0xff]
  %v33 = vld [vmem:[%s1 + $0x18] sm:$0xff]
  %v34 = vld [vmem:[%s2] sm:$0x1]
  %v36 = vperm.slane %v34, 0
  %vm38 = vcmask 261120
  %v40 = vsel %vm38, %v14, 0
  %v43 = vsel %vm38, %v15, 0
  %v46 = vsel %vm38, %v16, 0
  %v49 = vsel %vm38, %v17, 0
  %v52 = vsel %vm38, %v18, 0
  %v55 = vsel %vm38, %v19, 0
  %v58 = vsel %vm38, %v20, 0
  %v61 = vsel %vm38, %v21, 0
  %v64 = vsel %vm38, %v22, 0
  %v67 = vsel %vm38, %v23, 0
  %v70 = vsel %vm38, %v24, 0
  %v73 = vsel %vm38, %v25, 0
  %v76 = vsel %vm38, %v26, 0
  %v79 = vsel %vm38, %v27, 0
  %v82 = vsel %vm38, %v28, 0
  %v85 = vsel %vm38, %v29, 0
  %87 = vmatpush.msra.mxu0 0.0
  %88 = vmatpush.msra.mxu0 0.0
  %89 = vmatpush.msra.mxu0 0.0
  %90 = vmatpush.msra.mxu0 0.0
  %91 = vmatpush.msra.mxu0 0.0
  %92 = vmatpush.msra.mxu0 0.0
  %93 = vmatpush.msra.mxu0 0.0
  %94 = vmatpush.msra.mxu0 0.0
  %95 = vmatpush.msra.mxu0 0.0
  %96 = vmatpush.msra.mxu0 0.0
  %97 = vmatpush.msra.mxu0 0.0
  %98 = vmatpush.msra.mxu0 0.0
  %99 = vmatpush.msra.mxu0 %v33
  %100 = vmatpush.msra.mxu0 %v32
  %101 = vmatpush.msra.mxu0 %v31
  %102 = vmatpush.msra.mxu0 %v30
  %103 = vmatmul.f32.gmra.mxu0 %v40
  %v104 = vpop.f32.mrf.mxu0
  %v105 = vadd.f32 %v36, %v104
  %106 = vmatmul.f32.gmra.mxu0 %v43
  %v107 = vpop.f32.mrf.mxu0
  %v108 = vadd.f32 %v36, %v107
  %109 = vmatmul.f32.gmra.mxu0 %v46
  %v110 = vpop.f32.mrf.mxu0
  %v111 = vadd.f32 %v36, %v110
  %112 = vmatmul.f32.gmra.mxu0 %v49
  %v113 = vpop.f32.mrf.mxu0
  %v114 = vadd.f32 %v36, %v113
  %115 = vmatmul.f32.gmra.mxu0 %v52
  %v116 = vpop.f32.mrf.mxu0
  %v117 = vadd.f32 %v36, %v116
  %118 = vmatmul.f32.gmra.mxu0 %v55
  %v119 = vpop.f32.mrf.mxu0
  %v120 = vadd.f32 %v36, %v119
  %121 = vmatmul.f32.gmra.mxu0 %v58
  %v122 = vpop.f32.mrf.mxu0
  %v123 = vadd.f32 %v36, %v122
  %124 = vmatmul.f32.gmra.mxu0 %v61
  %v125 = vpop.f32.mrf.mxu0
  %v126 = vadd.f32 %v36, %v125
  %127 = vmatmul.f32.gmra.mxu0 %v64
  %v128 = vpop.f32.mrf.mxu0
  %v129 = vadd.f32 %v36, %v128
  %130 = vmatmul.f32.gmra.mxu0 %v67
  %v131 = vpop.f32.mrf.mxu0
  %v132 = vadd.f32 %v36, %v131
  %133 = vmatmul.f32.gmra.mxu0 %v70
  %v134 = vpop.f32.mrf.mxu0
  %v135 = vadd.f32 %v36, %v134
  %136 = vmatmul.f32.gmra.mxu0 %v73
  %v137 = vpop.f32.mrf.mxu0
  %v138 = vadd.f32 %v36, %v137
  %139 = vmatmul.f32.gmra.mxu0 %v76
  %v140 = vpop.f32.mrf.mxu0
  %v141 = vadd.f32 %v36, %v140
  %142 = vmatmul.f32.gmra.mxu0 %v79
  %v143 = vpop.f32.mrf.mxu0
  %v144 = vadd.f32 %v36, %v143
  %145 = vmatmul.f32.gmra.mxu0 %v82
  %v146 = vpop.f32.mrf.mxu0
  %v147 = vadd.f32 %v36, %v146
  %148 = vmatmul.f32.gmra.mxu0 %v85
  %v149 = vpop.f32.mrf.mxu0
  %v150 = vadd.f32 %v36, %v149
  %151 = vdwg.mxu0
  %v152 = vmax.f32 %v105, 0.0
  %v153 = vmax.f32 %v108, 0.0
  %v154 = vmax.f32 %v111, 0.0
  %v155 = vmax.f32 %v114, 0.0
  %v156 = vmax.f32 %v117, 0.0
  %v157 = vmax.f32 %v120, 0.0
  %v158 = vmax.f32 %v123, 0.0
  %v159 = vmax.f32 %v126, 0.0
  %v160 = vmax.f32 %v129, 0.0
  %v161 = vmax.f32 %v132, 0.0
  %v162 = vmax.f32 %v135, 0.0
  %v163 = vmax.f32 %v138, 0.0
  %v164 = vmax.f32 %v141, 0.0
  %v165 = vmax.f32 %v144, 0.0
  %v166 = vmax.f32 %v147, 0.0
  %v167 = vmax.f32 %v150, 0.0
  %168 = vst.msk [vmem:[%s3] sm:$0xff] %vm38, %v152
  %169 = vst.msk [vmem:[%s3 + $0x8] sm:$0xff] %vm38, %v153
  %170 = vst.msk [vmem:[%s3 + $0x10] sm:$0xff] %vm38, %v154
  %171 = vst.msk [vmem:[%s3 + $0x18] sm:$0xff] %vm38, %v155
  %172 = vst.msk [vmem:[%s3 + $0x20] sm:$0xff] %vm38, %v156
  %173 = vst.msk [vmem:[%s3 + $0x28] sm:$0xff] %vm38, %v157
  %174 = vst.msk [vmem:[%s3 + $0x30] sm:$0xff] %vm38, %v158
  %175 = vst.msk [vmem:[%s3 + $0x38] sm:$0xff] %vm38, %v159
  %176 = vst.msk [vmem:[%s3 + $0x40] sm:$0xff] %vm38, %v160
  %177 = vst.msk [vmem:[%s3 + $0x48] sm:$0xff] %vm38, %v161
  %178 = vst.msk [vmem:[%s3 + $0x50] sm:$0xff] %vm38, %v162
  %179 = vst.msk [vmem:[%s3 + $0x58] sm:$0xff] %vm38, %v163
  %180 = vst.msk [vmem:[%s3 + $0x60] sm:$0xff] %vm38, %v164
  %181 = vst.msk [vmem:[%s3 + $0x68] sm:$0xff] %vm38, %v165
  %182 = vst.msk [vmem:[%s3 + $0x70] sm:$0xff] %vm38, %v166
  %183 = vst.msk [vmem:[%s3 + $0x78] sm:$0xff] %vm38, %v167
  // Predicated region
  $region14: #{fagcn_forward.4} parent=0 // pred_check
    _
  $region15: #{fagcn_forward.4} parent=0 // pred_check_branch
    %185 = sbr.rel (0) target = $region17
  $region16: #{fagcn_forward.4} parent=0 // pred_region
    _
  $region17: #{fagcn_forward.4} parent=0 // pred_fallthru
    _
  // Predicated region
  $region18: #{fagcn_forward.4} parent=0 // pred_check
    _
  $region19: #{fagcn_forward.4} parent=0 // pred_check_branch
    %187 = sbr.rel (0) target = $region21
  $region20: #{fagcn_forward.4} parent=0 // pred_region
    _
  $region21: #{fagcn_forward.4} parent=0 // pred_fallthru
    _

// kernel: fagcn_forward.7
$region0: #{fagcn_forward.7}
  #allocation0 [shape = 'u32[]', space=smem, size = 0x4, offset = 0x4, fixed_abs, tag = 'smem constant byte address 0x4 - core index']
  #allocation1 [shape = 'u32[72,128]{1,0:T(1,128)}', space=vmem, size = 0x9000, scoped, tag = 'internal scratch']
  %s0 = inlined_call_operand.vmem [shape: f32[128,32], index: 0, kind: input, shape index: {}]
  %s1 = inlined_call_operand.vmem [shape: f32[32,128], index: 1, kind: input, shape index: {}]
  %s2 = inlined_call_operand.vmem [shape: f32[1,128], index: 2, kind: input, shape index: {}]
  %s3 = inlined_call_operand.vmem [shape: f32[128,128], index: 3, kind: output, shape index: {}]
  %s4 = sld [smem:[#allocation0]]
  $region22: #{fagcn_forward.7} parent=0
    _
  %s6 = ssub.s32 1, %s4
  %s7 = scalar_select 0, %s6, %s4
  // Predicated region
  $region2: #{fagcn_forward.7} parent=0 // pred_check
    _
  $region3: #{fagcn_forward.7} parent=0 // pred_check_branch
    %9 = sbr.rel (0) target = $region5
  $region4: #{fagcn_forward.7} parent=0 // pred_region
    _
  $region5: #{fagcn_forward.7} parent=0 // pred_fallthru
    _
  // Predicated region
  $region6: #{fagcn_forward.7} parent=0 // pred_check
    _
  $region7: #{fagcn_forward.7} parent=0 // pred_check_branch
    %11 = sbr.rel (0) target = $region9
  $region8: #{fagcn_forward.7} parent=0 // pred_region
    _
  $region9: #{fagcn_forward.7} parent=0 // pred_fallthru
    _
  // Predicated region
  $region10: #{fagcn_forward.7} parent=0 // pred_check
    _
  $region11: #{fagcn_forward.7} parent=0 // pred_check_branch
    %13 = sbr.rel (0) target = $region13
  $region12: #{fagcn_forward.7} parent=0 // pred_region
    _
  $region13: #{fagcn_forward.7} parent=0 // pred_fallthru
    _
  %v14 = vld [vmem:[%s0] sm:$0xff]
  %v15 = vld [vmem:[%s0 + $0x8] sm:$0xff]
  %v16 = vld [vmem:[%s0 + $0x10] sm:$0xff]
  %v17 = vld [vmem:[%s0 + $0x18] sm:$0xff]
  %v18 = vld [vmem:[%s0 + $0x20] sm:$0xff]
  %v19 = vld [vmem:[%s0 + $0x28] sm:$0xff]
  %v20 = vld [vmem:[%s0 + $0x30] sm:$0xff]
  %v21 = vld [vmem:[%s0 + $0x38] sm:$0xff]
  %v22 = vld [vmem:[%s0 + $0x40] sm:$0xff]
  %v23 = vld [vmem:[%s0 + $0x48] sm:$0xff]
  %v24 = vld [vmem:[%s0 + $0x50] sm:$0xff]
  %v25 = vld [vmem:[%s0 + $0x58] sm:$0xff]
  %v26 = vld [vmem:[%s0 + $0x60] sm:$0xff]
  %v27 = vld [vmem:[%s0 + $0x68] sm:$0xff]
  %v28 = vld [vmem:[%s0 + $0x70] sm:$0xff]
  %v29 = vld [vmem:[%s0 + $0x78] sm:$0xff]
  %v30 = vld [vmem:[%s1] sm:$0xff]
  %v31 = vld [vmem:[%s1 + $0x8] sm:$0xff]
  %v32 = vld [vmem:[%s1 + $0x10] sm:$0xff]
  %v33 = vld [vmem:[%s1 + $0x18] sm:$0xff]
  %v34 = vld [vmem:[%s2] sm:$0x1]
  %v36 = vperm.slane %v34, 0
  %vm38 = vcmask 261120
  %v40 = vsel %vm38, %v14, 0
  %v43 = vsel %vm38, %v15, 0
  %v46 = vsel %vm38, %v16, 0
  %v49 = vsel %vm38, %v17, 0
  %v52 = vsel %vm38, %v18, 0
  %v55 = vsel %vm38, %v19, 0
  %v58 = vsel %vm38, %v20, 0
  %v61 = vsel %vm38, %v21, 0
  %v64 = vsel %vm38, %v22, 0
  %v67 = vsel %vm38, %v23, 0
  %v70 = vsel %vm38, %v24, 0
  %v73 = vsel %vm38, %v25, 0
  %v76 = vsel %vm38, %v26, 0
  %v79 = vsel %vm38, %v27, 0
  %v82 = vsel %vm38, %v28, 0
  %v85 = vsel %vm38, %v29, 0
  %87 = vmatpush.msra.mxu0 0.0
  %88 = vmatpush.msra.mxu0 0.0
  %89 = vmatpush.msra.mxu0 0.0
  %90 = vmatpush.msra.mxu0 0.0
  %91 = vmatpush.msra.mxu0 0.0
  %92 = vmatpush.msra.mxu0 0.0
  %93 = vmatpush.msra.mxu0 0.0
  %94 = vmatpush.msra.mxu0 0.0
  %95 = vmatpush.msra.mxu0 0.0
  %96 = vmatpush.msra.mxu0 0.0
  %97 = vmatpush.msra.mxu0 0.0
  %98 = vmatpush.msra.mxu0 0.0
  %99 = vmatpush.msra.mxu0 %v33
  %100 = vmatpush.msra.mxu0 %v32
  %101 = vmatpush.msra.mxu0 %v31
  %102 = vmatpush.msra.mxu0 %v30
  %103 = vmatmul.f32.gmra.mxu0 %v40
  %v104 = vpop.f32.mrf.mxu0
  %v105 = vadd.f32 %v36, %v104
  %106 = vmatmul.f32.gmra.mxu0 %v43
  %v107 = vpop.f32.mrf.mxu0
  %v108 = vadd.f32 %v36, %v107
  %109 = vmatmul.f32.gmra.mxu0 %v46
  %v110 = vpop.f32.mrf.mxu0
  %v111 = vadd.f32 %v36, %v110
  %112 = vmatmul.f32.gmra.mxu0 %v49
  %v113 = vpop.f32.mrf.mxu0
  %v114 = vadd.f32 %v36, %v113
  %115 = vmatmul.f32.gmra.mxu0 %v52
  %v116 = vpop.f32.mrf.mxu0
  %v117 = vadd.f32 %v36, %v116
  %118 = vmatmul.f32.gmra.mxu0 %v55
  %v119 = vpop.f32.mrf.mxu0
  %v120 = vadd.f32 %v36, %v119
  %121 = vmatmul.f32.gmra.mxu0 %v58
  %v122 = vpop.f32.mrf.mxu0
  %v123 = vadd.f32 %v36, %v122
  %124 = vmatmul.f32.gmra.mxu0 %v61
  %v125 = vpop.f32.mrf.mxu0
  %v126 = vadd.f32 %v36, %v125
  %127 = vmatmul.f32.gmra.mxu0 %v64
  %v128 = vpop.f32.mrf.mxu0
  %v129 = vadd.f32 %v36, %v128
  %130 = vmatmul.f32.gmra.mxu0 %v67
  %v131 = vpop.f32.mrf.mxu0
  %v132 = vadd.f32 %v36, %v131
  %133 = vmatmul.f32.gmra.mxu0 %v70
  %v134 = vpop.f32.mrf.mxu0
  %v135 = vadd.f32 %v36, %v134
  %136 = vmatmul.f32.gmra.mxu0 %v73
  %v137 = vpop.f32.mrf.mxu0
  %v138 = vadd.f32 %v36, %v137
  %139 = vmatmul.f32.gmra.mxu0 %v76
  %v140 = vpop.f32.mrf.mxu0
  %v141 = vadd.f32 %v36, %v140
  %142 = vmatmul.f32.gmra.mxu0 %v79
  %v143 = vpop.f32.mrf.mxu0
  %v144 = vadd.f32 %v36, %v143
  %145 = vmatmul.f32.gmra.mxu0 %v82
  %v146 = vpop.f32.mrf.mxu0
  %v147 = vadd.f32 %v36, %v146
  %148 = vmatmul.f32.gmra.mxu0 %v85
  %v149 = vpop.f32.mrf.mxu0
  %v150 = vadd.f32 %v36, %v149
  %151 = vdwg.mxu0
  %152 = vst [vmem:[%s3] sm:$0xff] %v105
  %153 = vst [vmem:[%s3 + $0x8] sm:$0xff] %v108
  %154 = vst [vmem:[%s3 + $0x10] sm:$0xff] %v111
  %155 = vst [vmem:[%s3 + $0x18] sm:$0xff] %v114
  %156 = vst [vmem:[%s3 + $0x20] sm:$0xff] %v117
  %157 = vst [vmem:[%s3 + $0x28] sm:$0xff] %v120
  %158 = vst [vmem:[%s3 + $0x30] sm:$0xff] %v123
  %159 = vst [vmem:[%s3 + $0x38] sm:$0xff] %v126
  %160 = vst [vmem:[%s3 + $0x40] sm:$0xff] %v129
  %161 = vst [vmem:[%s3 + $0x48] sm:$0xff] %v132
  %162 = vst [vmem:[%s3 + $0x50] sm:$0xff] %v135
  %163 = vst [vmem:[%s3 + $0x58] sm:$0xff] %v138
  %164 = vst [vmem:[%s3 + $0x60] sm:$0xff] %v141
  %165 = vst [vmem:[%s3 + $0x68] sm:$0xff] %v144
  %166 = vst [vmem:[%s3 + $0x70] sm:$0xff] %v147
  %167 = vst [vmem:[%s3 + $0x78] sm:$0xff] %v150
  // Predicated region
  $region14: #{fagcn_forward.7} parent=0 // pred_check
    _
  $region15: #{fagcn_forward.7} parent=0 // pred_check_branch
    %169 = sbr.rel (0) target = $region17
  $region16: #{fagcn_forward.7} parent=0 // pred_region
    _
  $region17: #{fagcn_forward.7} parent=0 // pred_fallthru
    _
  // Predicated region
  $region18: #{fagcn_forward.7} parent=0 // pred_check
    _
  $region19: #{fagcn_forward.7} parent=0 // pred_check_branch
    %171 = sbr.rel (0) target = $region21
  $region20: #{fagcn_forward.7} parent=0 // pred_region
    _
  $region21: #{fagcn_forward.7} parent=0 // pred_fallthru
    _

// kernel: fagcn_forward.5
$region0: #{fagcn_forward.5}
  #allocation0 [shape = 'u32[]', space=smem, size = 0x4, offset = 0x4, fixed_abs, tag = 'smem constant byte address 0x4 - core index']
  #allocation1 [shape = 'u32[72,128]{1,0:T(1,128)}', space=vmem, size = 0x9000, scoped, tag = 'internal scratch']
  #allocation2 [shape = 'f32[128,32]{1,0:T(8,128)}', space=vmem, size = 0x10000, scoped, tag = 'scratch operand']
  #allocation3 [shape = 's32[1]{0}', space=sflag, size = 0x4, scoped, tag = 'scoped memory for fagcn_forward.5']
  #allocation4 [shape = 's32[1]{0:T(128)S(6)}', space=smem, size = 0x200, scoped, tag = 'prefetched SMEM operand 0']
  #allocation5 [shape = 'f32[1]{0:T(128)S(6)}', space=smem, size = 0x200, scoped, tag = 'scoped memory for fagcn_forward.5']
  %s0 = inlined_call_operand.<no memory space> [shape: s32[1], index: 0, kind: input, shape index: {}]
  %s1 = inlined_call_operand.vmem [shape: f32[128,128], index: 1, kind: input, shape index: {}]
  %s2 = inlined_call_operand.vmem [shape: f32[128,32], index: 2, kind: input, shape index: {}, may-alias: {2,3,4}]
  %s3 = inlined_call_operand.vmem [shape: f32[128,32], index: 3, kind: input, shape index: {}, may-alias: {2,3,4}]
  %s4 = inlined_call_operand.vmem [shape: f32[128,32], index: 4, kind: input, shape index: {}, may-alias: {2,3,4}]
  %s5 = inlined_call_operand.vmem [shape: f32[128,1], index: 5, kind: input, shape index: {}, may-alias: {5,6}]
  %s6 = inlined_call_operand.vmem [shape: f32[128,1], index: 6, kind: input, shape index: {}, may-alias: {5,6}]
  %s7 = inlined_call_operand.vmem [shape: f32[1,32], index: 7, kind: input, shape index: {}]
  %s8 = inlined_call_operand.vmem [shape: f32[1,32], index: 8, kind: input, shape index: {}]
  %s9 = inlined_call_operand.<no memory space> [shape: f32[1], index: 9, kind: input, shape index: {}]
  %s10 = inlined_call_operand.vmem [shape: f32[128,32], index: 10, kind: output, shape index: {}]
  %s11 = sld [smem:[#allocation0]]
  $region58: #{fagcn_forward.5} parent=0
    _
  %s13 = ssub.s32 1, %s11
  %s14 = scalar_select 0, %s13, %s11
  %15 = sst [smem:[#allocation4]] %s0
  %16 = sst [smem:[#allocation5]] %s9
  // Predicated region
  $region2: #{fagcn_forward.5} parent=0 // pred_check
    _
  $region3: #{fagcn_forward.5} parent=0 // pred_check_branch
    %18 = sbr.rel (0) target = $region5
  $region4: #{fagcn_forward.5} parent=0 // pred_region
    _
  $region5: #{fagcn_forward.5} parent=0 // pred_fallthru
    _
  // Predicated region
  $region6: #{fagcn_forward.5} parent=0 // pred_check
    _
  $region7: #{fagcn_forward.5} parent=0 // pred_check_branch
    %20 = sbr.rel (0) target = $region9
  $region8: #{fagcn_forward.5} parent=0 // pred_region
    _
  $region9: #{fagcn_forward.5} parent=0 // pred_fallthru
    _
  // Predicated region
  $region10: #{fagcn_forward.5} parent=0 // pred_check
    _
  $region11: #{fagcn_forward.5} parent=0 // pred_check_branch
    %22 = sbr.rel (0) target = $region13
  $region12: #{fagcn_forward.5} parent=0 // pred_region
    _
  $region13: #{fagcn_forward.5} parent=0 // pred_fallthru
    _
  // Predicated region
  $region14: #{fagcn_forward.5} parent=0 // pred_check
    _
  $region15: #{fagcn_forward.5} parent=0 // pred_check_branch
    %24 = sbr.rel (0) target = $region17
  $region16: #{fagcn_forward.5} parent=0 // pred_region
    _
  $region17: #{fagcn_forward.5} parent=0 // pred_fallthru
    _
  // Predicated region
  $region18: #{fagcn_forward.5} parent=0 // pred_check
    _
  $region19: #{fagcn_forward.5} parent=0 // pred_check_branch
    %26 = sbr.rel (0) target = $region21
  $region20: #{fagcn_forward.5} parent=0 // pred_region
    _
  $region21: #{fagcn_forward.5} parent=0 // pred_fallthru
    _
  // Predicated region
  $region22: #{fagcn_forward.5} parent=0 // pred_check
    _
  $region23: #{fagcn_forward.5} parent=0 // pred_check_branch
    %28 = sbr.rel (0) target = $region25
  $region24: #{fagcn_forward.5} parent=0 // pred_region
    _
  $region25: #{fagcn_forward.5} parent=0 // pred_fallthru
    _
  // Predicated region
  $region26: #{fagcn_forward.5} parent=0 // pred_check
    _
  $region27: #{fagcn_forward.5} parent=0 // pred_check_branch
    %30 = sbr.rel (0) target = $region29
  $region28: #{fagcn_forward.5} parent=0 // pred_region
    _
  $region29: #{fagcn_forward.5} parent=0 // pred_fallthru
    _
  // Predicated region
  $region30: #{fagcn_forward.5} parent=0 // pred_check
    _
  $region31: #{fagcn_forward.5} parent=0 // pred_check_branch
    %32 = sbr.rel (0) target = $region33
  $region32: #{fagcn_forward.5} parent=0 // pred_region
    _
  $region33: #{fagcn_forward.5} parent=0 // pred_fallthru
    _
  // Predicated region
  $region34: #{fagcn_forward.5} parent=0 // pred_check
    _
  $region35: #{fagcn_forward.5} parent=0 // pred_check_branch
    %34 = sbr.rel (0) target = $region37
  $region36: #{fagcn_forward.5} parent=0 // pred_region
    _
  $region37: #{fagcn_forward.5} parent=0 // pred_fallthru
    _
  %p35 = scmp.eq.s32.totalorder 0, 0
  // Predicated region
  $region38: #{fagcn_forward.5} parent=0 // pred_check
    %p36 = pneg %p35
  $region39: #{fagcn_forward.5} parent=0 // pred_check_branch
    %38 = sbr.rel (%p36) target = $region41
  $region40: #{fagcn_forward.5} parent=0 // pred_region
    %vm39 = vcmask 261120
    %40 = vst.msk [vmem:[#allocation2] sm:$0xff] %vm39, 0.0
    %41 = vst.msk [vmem:[#allocation2 + $0x8] sm:$0xff] %vm39, 0.0
    %42 = vst.msk [vmem:[#allocation2 + $0x10] sm:$0xff] %vm39, 0.0
    %43 = vst.msk [vmem:[#allocation2 + $0x18] sm:$0xff] %vm39, 0.0
    %44 = vst.msk [vmem:[#allocation2 + $0x20] sm:$0xff] %vm39, 0.0
    %45 = vst.msk [vmem:[#allocation2 + $0x28] sm:$0xff] %vm39, 0.0
    %46 = vst.msk [vmem:[#allocation2 + $0x30] sm:$0xff] %vm39, 0.0
    %47 = vst.msk [vmem:[#allocation2 + $0x38] sm:$0xff] %vm39, 0.0
    %48 = vst.msk [vmem:[#allocation2 + $0x40] sm:$0xff] %vm39, 0.0
    %49 = vst.msk [vmem:[#allocation2 + $0x48] sm:$0xff] %vm39, 0.0
    %50 = vst.msk [vmem:[#allocation2 + $0x50] sm:$0xff] %vm39, 0.0
    %51 = vst.msk [vmem:[#allocation2 + $0x58] sm:$0xff] %vm39, 0.0
    %52 = vst.msk [vmem:[#allocation2 + $0x60] sm:$0xff] %vm39, 0.0
    %53 = vst.msk [vmem:[#allocation2 + $0x68] sm:$0xff] %vm39, 0.0
    %54 = vst.msk [vmem:[#allocation2 + $0x70] sm:$0xff] %vm39, 0.0
    %55 = vst.msk [vmem:[#allocation2 + $0x78] sm:$0xff] %vm39, 0.0
  $region41: #{fagcn_forward.5} parent=0 // pred_fallthru
    _
  %s56 = sadd.s32 0, 0
  %s57 = sld [smem:[#allocation4 + %s56]]
  %p58 = scmp.gt.s32.totalorder %s57, 0
  // Predicated region
  $region42: #{fagcn_forward.5} parent=0 // pred_check
    %p59 = pneg %p58
  $region43: #{fagcn_forward.5} parent=0 // pred_check_branch
    %61 = sbr.rel (%p59) target = $region45
  $region44: #{fagcn_forward.5} parent=0 // pred_region
    %v62 = vld [vmem:[%s2] sm:$0xff]
    %v63 = vld [vmem:[%s2 + $0x8] sm:$0xff]
    %v64 = vld [vmem:[%s2 + $0x10] sm:$0xff]
    %v65 = vld [vmem:[%s2 + $0x18] sm:$0xff]
    %v66 = vld [vmem:[%s2 + $0x20] sm:$0xff]
    %v67 = vld [vmem:[%s2 + $0x28] sm:$0xff]
    %v68 = vld [vmem:[%s2 + $0x30] sm:$0xff]
    %v69 = vld [vmem:[%s2 + $0x38] sm:$0xff]
    %v70 = vld [vmem:[%s2 + $0x40] sm:$0xff]
    %v71 = vld [vmem:[%s2 + $0x48] sm:$0xff]
    %v72 = vld [vmem:[%s2 + $0x50] sm:$0xff]
    %v73 = vld [vmem:[%s2 + $0x58] sm:$0xff]
    %v74 = vld [vmem:[%s2 + $0x60] sm:$0xff]
    %v75 = vld [vmem:[%s2 + $0x68] sm:$0xff]
    %v76 = vld [vmem:[%s2 + $0x70] sm:$0xff]
    %v77 = vld [vmem:[%s2 + $0x78] sm:$0xff]
    %v78 = vld [vmem:[%s3] sm:$0xff]
    %v79 = vld [vmem:[%s3 + $0x8] sm:$0xff]
    %v80 = vld [vmem:[%s3 + $0x10] sm:$0xff]
    %v81 = vld [vmem:[%s3 + $0x18] sm:$0xff]
    %v82 = vld [vmem:[%s3 + $0x20] sm:$0xff]
    %v83 = vld [vmem:[%s3 + $0x28] sm:$0xff]
    %v84 = vld [vmem:[%s3 + $0x30] sm:$0xff]
    %v85 = vld [vmem:[%s3 + $0x38] sm:$0xff]
    %v86 = vld [vmem:[%s3 + $0x40] sm:$0xff]
    %v87 = vld [vmem:[%s3 + $0x48] sm:$0xff]
    %v88 = vld [vmem:[%s3 + $0x50] sm:$0xff]
    %v89 = vld [vmem:[%s3 + $0x58] sm:$0xff]
    %v90 = vld [vmem:[%s3 + $0x60] sm:$0xff]
    %v91 = vld [vmem:[%s3 + $0x68] sm:$0xff]
    %v92 = vld [vmem:[%s3 + $0x70] sm:$0xff]
    %v93 = vld [vmem:[%s3 + $0x78] sm:$0xff]
    %v94 = vld [vmem:[%s7] sm:$0x1]
    %v96 = vperm.slane %v94, 0
    %v98 = vmul.f32 %v62, %v96
    %v99 = vmul.f32 %v63, %v96
    %v100 = vmul.f32 %v64, %v96
    %v101 = vmul.f32 %v65, %v96
    %v102 = vmul.f32 %v66, %v96
    %v103 = vmul.f32 %v67, %v96
    %v104 = vmul.f32 %v68, %v96
    %v105 = vmul.f32 %v69, %v96
    %v106 = vmul.f32 %v70, %v96
    %v107 = vmul.f32 %v71, %v96
    %v108 = vmul.f32 %v72, %v96
    %v109 = vmul.f32 %v73, %v96
    %v110 = vmul.f32 %v74, %v96
    %v111 = vmul.f32 %v75, %v96
    %v112 = vmul.f32 %v76, %v96
    %v113 = vmul.f32 %v77, %v96
    %vm114 = vcmask 261120
    %v115 = vsel %vm114, %v98, 0.0
    %116 = vadd.xlane.f32.xlu0 %v115
    %v117 = vpop.xlane.xlu0 %116
    %v118 = vsel %vm114, %v99, 0.0
    %119 = vadd.xlane.f32.xlu0 %v118
    %v120 = vpop.xlane.xlu0 %119
    %v121 = vsel %vm114, %v100, 0.0
    %122 = vadd.xlane.f32.xlu0 %v121
    %v123 = vpop.xlane.xlu0 %122
    %v124 = vsel %vm114, %v101, 0.0
    %125 = vadd.xlane.f32.xlu0 %v124
    %v126 = vpop.xlane.xlu0 %125
    %v127 = vsel %vm114, %v102, 0.0
    %128 = vadd.xlane.f32.xlu0 %v127
    %v129 = vpop.xlane.xlu0 %128
    %v130 = vsel %vm114, %v103, 0.0
    %131 = vadd.xlane.f32.xlu0 %v130
    %v132 = vpop.xlane.xlu0 %131
    %v133 = vsel %vm114, %v104, 0.0
    %134 = vadd.xlane.f32.xlu0 %v133
    %v135 = vpop.xlane.xlu0 %134
    %v136 = vsel %vm114, %v105, 0.0
    %137 = vadd.xlane.f32.xlu0 %v136
    %v138 = vpop.xlane.xlu0 %137
    %v139 = vsel %vm114, %v106, 0.0
    %140 = vadd.xlane.f32.xlu0 %v139
    %v141 = vpop.xlane.xlu0 %140
    %v142 = vsel %vm114, %v107, 0.0
    %143 = vadd.xlane.f32.xlu0 %v142
    %v144 = vpop.xlane.xlu0 %143
    %v145 = vsel %vm114, %v108, 0.0
    %146 = vadd.xlane.f32.xlu0 %v145
    %v147 = vpop.xlane.xlu0 %146
    %v148 = vsel %vm114, %v109, 0.0
    %149 = vadd.xlane.f32.xlu0 %v148
    %v150 = vpop.xlane.xlu0 %149
    %v151 = vsel %vm114, %v110, 0.0
    %152 = vadd.xlane.f32.xlu0 %v151
    %v153 = vpop.xlane.xlu0 %152
    %v154 = vsel %vm114, %v111, 0.0
    %155 = vadd.xlane.f32.xlu0 %v154
    %v156 = vpop.xlane.xlu0 %155
    %v157 = vsel %vm114, %v112, 0.0
    %158 = vadd.xlane.f32.xlu0 %v157
    %v159 = vpop.xlane.xlu0 %158
    %v160 = vsel %vm114, %v113, 0.0
    %161 = vadd.xlane.f32.xlu0 %v160
    %v162 = vpop.xlane.xlu0 %161
    %v163 = vld [vmem:[%s8] sm:$0x1]
    %v165 = vperm.slane %v163, 0
    %v167 = vmul.f32 %v78, %v165
    %v168 = vmul.f32 %v79, %v165
    %v169 = vmul.f32 %v80, %v165
    %v170 = vmul.f32 %v81, %v165
    %v171 = vmul.f32 %v82, %v165
    %v172 = vmul.f32 %v83, %v165
    %v173 = vmul.f32 %v84, %v165
    %v174 = vmul.f32 %v85, %v165
    %v175 = vmul.f32 %v86, %v165
    %v176 = vmul.f32 %v87, %v165
    %v177 = vmul.f32 %v88, %v165
    %v178 = vmul.f32 %v89, %v165
    %v179 = vmul.f32 %v90, %v165
    %v180 = vmul.f32 %v91, %v165
    %v181 = vmul.f32 %v92, %v165
    %v182 = vmul.f32 %v93, %v165
    %v183 = vsel %vm114, %v167, 0.0
    %184 = vadd.xlane.f32.xlu0 %v183
    %v185 = vpop.xlane.xlu0 %184
    %v186 = vsel %vm114, %v168, 0.0
    %187 = vadd.xlane.f32.xlu0 %v186
    %v188 = vpop.xlane.xlu0 %187
    %v189 = vsel %vm114, %v169, 0.0
    %190 = vadd.xlane.f32.xlu0 %v189
    %v191 = vpop.xlane.xlu0 %190
    %v192 = vsel %vm114, %v170, 0.0
    %193 = vadd.xlane.f32.xlu0 %v192
    %v194 = vpop.xlane.xlu0 %193
    %v195 = vsel %vm114, %v171, 0.0
    %196 = vadd.xlane.f32.xlu0 %v195
    %v197 = vpop.xlane.xlu0 %196
    %v198 = vsel %vm114, %v172, 0.0
    %199 = vadd.xlane.f32.xlu0 %v198
    %v200 = vpop.xlane.xlu0 %199
    %v201 = vsel %vm114, %v173, 0.0
    %202 = vadd.xlane.f32.xlu0 %v201
    %v203 = vpop.xlane.xlu0 %202
    %v204 = vsel %vm114, %v174, 0.0
    %205 = vadd.xlane.f32.xlu0 %v204
    %v206 = vpop.xlane.xlu0 %205
    %v207 = vsel %vm114, %v175, 0.0
    %208 = vadd.xlane.f32.xlu0 %v207
    %v209 = vpop.xlane.xlu0 %208
    %v210 = vsel %vm114, %v176, 0.0
    %211 = vadd.xlane.f32.xlu0 %v210
    %v212 = vpop.xlane.xlu0 %211
    %v213 = vsel %vm114, %v177, 0.0
    %214 = vadd.xlane.f32.xlu0 %v213
    %v215 = vpop.xlane.xlu0 %214
    %v216 = vsel %vm114, %v178, 0.0
    %217 = vadd.xlane.f32.xlu0 %v216
    %v218 = vpop.xlane.xlu0 %217
    %v219 = vsel %vm114, %v179, 0.0
    %220 = vadd.xlane.f32.xlu0 %v219
    %v221 = vpop.xlane.xlu0 %220
    %v222 = vsel %vm114, %v180, 0.0
    %223 = vadd.xlane.f32.xlu0 %v222
    %v224 = vpop.xlane.xlu0 %223
    %v225 = vsel %vm114, %v181, 0.0
    %226 = vadd.xlane.f32.xlu0 %v225
    %v227 = vpop.xlane.xlu0 %226
    %v228 = vsel %vm114, %v182, 0.0
    %229 = vadd.xlane.f32.xlu0 %v228
    %v230 = vpop.xlane.xlu0 %229
    %231 = vxpose.xlu0.b32.start [1/16] %v185, 128
    %232 = vxpose.xlu0.b32.cont [2/16] %v188, 128
    %233 = vxpose.xlu0.b32.cont [3/16] %v191, 128
    %234 = vxpose.xlu0.b32.cont [4/16] %v194, 128
    %235 = vxpose.xlu0.b32.cont [5/16] %v197, 128
    %236 = vxpose.xlu0.b32.cont [6/16] %v200, 128
    %237 = vxpose.xlu0.b32.cont [7/16] %v203, 128
    %238 = vxpose.xlu0.b32.cont [8/16] %v206, 128
    %239 = vxpose.xlu0.b32.cont [9/16] %v209, 128
    %240 = vxpose.xlu0.b32.cont [10/16] %v212, 128
    %241 = vxpose.xlu0.b32.cont [11/16] %v215, 128
    %242 = vxpose.xlu0.b32.cont [12/16] %v218, 128
    %243 = vxpose.xlu0.b32.cont [13/16] %v221, 128
    %244 = vxpose.xlu0.b32.cont [14/16] %v224, 128
    %245 = vxpose.xlu0.b32.cont [15/16] %v227, 128
    %246 = vxpose.xlu0.b32.end [16/16] %v230, 128
    %v247 = vpop.trf.xlu0
    %v248 = vpop.trf.xlu0
    %v249 = vpop.trf.xlu0
    %v250 = vpop.trf.xlu0
    %v251 = vpop.trf.xlu0
    %v252 = vpop.trf.xlu0
    %v253 = vpop.trf.xlu0
    %v254 = vpop.trf.xlu0
    %v255 = vpop.trf.xlu0
    %v256 = vpop.trf.xlu0
    %v257 = vpop.trf.xlu0
    %v258 = vpop.trf.xlu0
    %v259 = vpop.trf.xlu0
    %v260 = vpop.trf.xlu0
    %v261 = vpop.trf.xlu0
    %v262 = vpop.trf.xlu0
    %v263 = vperm.slane %v247, 0
    %v264 = vadd.f32 %v117, %v263
    %v265 = vadd.f32 %v120, %v263
    %v266 = vadd.f32 %v123, %v263
    %v267 = vadd.f32 %v126, %v263
    %v268 = vadd.f32 %v129, %v263
    %v269 = vadd.f32 %v132, %v263
    %v270 = vadd.f32 %v135, %v263
    %v271 = vadd.f32 %v138, %v263
    %v272 = vadd.f32 %v141, %v263
    %v273 = vadd.f32 %v144, %v263
    %v274 = vadd.f32 %v147, %v263
    %v275 = vadd.f32 %v150, %v263
    %v276 = vadd.f32 %v153, %v263
    %v277 = vadd.f32 %v156, %v263
    %v278 = vadd.f32 %v159, %v263
    %v279 = vadd.f32 %v162, %v263
    %s280 = sld [smem:[#allocation5]]
    %v281 = vstv %s280
    %v282 = vadd.f32 %v264, %v281
    %v283 = vadd.f32 %v265, %v281
    %v284 = vadd.f32 %v266, %v281
    %v285 = vadd.f32 %v267, %v281
    %v286 = vadd.f32 %v268, %v281
    %v287 = vadd.f32 %v269, %v281
    %v288 = vadd.f32 %v270, %v281
    %v289 = vadd.f32 %v271, %v281
    %v290 = vadd.f32 %v272, %v281
    %v291 = vadd.f32 %v273, %v281
    %v292 = vadd.f32 %v274, %v281
    %v293 = vadd.f32 %v275, %v281
    %v294 = vadd.f32 %v276, %v281
    %v295 = vadd.f32 %v277, %v281
    %v296 = vadd.f32 %v278, %v281
    %v297 = vadd.f32 %v279, %v281
    %v298 = vtanh.pop %v282
    %v299 = vtanh.pop %v283
    %v300 = vtanh.pop %v284
    %v301 = vtanh.pop %v285
    %v302 = vtanh.pop %v286
    %v303 = vtanh.pop %v287
    %v304 = vtanh.pop %v288
    %v305 = vtanh.pop %v289
    %v306 = vtanh.pop %v290
    %v307 = vtanh.pop %v291
    %v308 = vtanh.pop %v292
    %v309 = vtanh.pop %v293
    %v310 = vtanh.pop %v294
    %v311 = vtanh.pop %v295
    %v312 = vtanh.pop %v296
    %v313 = vtanh.pop %v297
    %v314 = vld [vmem:[%s1] sm:$0xff]
    %v315 = vld [vmem:[%s1 + $0x8] sm:$0xff]
    %v316 = vld [vmem:[%s1 + $0x10] sm:$0xff]
    %v317 = vld [vmem:[%s1 + $0x18] sm:$0xff]
    %v318 = vld [vmem:[%s1 + $0x20] sm:$0xff]
    %v319 = vld [vmem:[%s1 + $0x28] sm:$0xff]
    %v320 = vld [vmem:[%s1 + $0x30] sm:$0xff]
    %v321 = vld [vmem:[%s1 + $0x38] sm:$0xff]
    %v322 = vld [vmem:[%s1 + $0x40] sm:$0xff]
    %v323 = vld [vmem:[%s1 + $0x48] sm:$0xff]
    %v324 = vld [vmem:[%s1 + $0x50] sm:$0xff]
    %v325 = vld [vmem:[%s1 + $0x58] sm:$0xff]
    %v326 = vld [vmem:[%s1 + $0x60] sm:$0xff]
    %v327 = vld [vmem:[%s1 + $0x68] sm:$0xff]
    %v328 = vld [vmem:[%s1 + $0x70] sm:$0xff]
    %v329 = vld [vmem:[%s1 + $0x78] sm:$0xff]
    %v330 = vmul.f32 %v298, %v314
    %v331 = vmul.f32 %v299, %v315
    %v332 = vmul.f32 %v300, %v316
    %v333 = vmul.f32 %v301, %v317
    %v334 = vmul.f32 %v302, %v318
    %v335 = vmul.f32 %v303, %v319
    %v336 = vmul.f32 %v304, %v320
    %v337 = vmul.f32 %v305, %v321
    %v338 = vmul.f32 %v306, %v322
    %v339 = vmul.f32 %v307, %v323
    %v340 = vmul.f32 %v308, %v324
    %v341 = vmul.f32 %v309, %v325
    %v342 = vmul.f32 %v310, %v326
    %v343 = vmul.f32 %v311, %v327
    %v344 = vmul.f32 %v312, %v328
    %v345 = vmul.f32 %v313, %v329
    %v346 = vld [vmem:[#allocation2] sm:$0xff]
    %v347 = vld [vmem:[#allocation2 + $0x8] sm:$0xff]
    %v348 = vld [vmem:[#allocation2 + $0x10] sm:$0xff]
    %v349 = vld [vmem:[#allocation2 + $0x18] sm:$0xff]
    %v350 = vld [vmem:[#allocation2 + $0x20] sm:$0xff]
    %v351 = vld [vmem:[#allocation2 + $0x28] sm:$0xff]
    %v352 = vld [vmem:[#allocation2 + $0x30] sm:$0xff]
    %v353 = vld [vmem:[#allocation2 + $0x38] sm:$0xff]
    %v354 = vld [vmem:[#allocation2 + $0x40] sm:$0xff]
    %v355 = vld [vmem:[#allocation2 + $0x48] sm:$0xff]
    %v356 = vld [vmem:[#allocation2 + $0x50] sm:$0xff]
    %v357 = vld [vmem:[#allocation2 + $0x58] sm:$0xff]
    %v358 = vld [vmem:[#allocation2 + $0x60] sm:$0xff]
    %v359 = vld [vmem:[#allocation2 + $0x68] sm:$0xff]
    %v360 = vld [vmem:[#allocation2 + $0x70] sm:$0xff]
    %v361 = vld [vmem:[#allocation2 + $0x78] sm:$0xff]
    %v362 = vld [vmem:[%s6] sm:$0xff]
    %v363 = vld [vmem:[%s6 + $0x8] sm:$0xff]
    %v364 = vld [vmem:[%s6 + $0x10] sm:$0xff]
    %v365 = vld [vmem:[%s6 + $0x18] sm:$0xff]
    %v366 = vld [vmem:[%s6 + $0x20] sm:$0xff]
    %v367 = vld [vmem:[%s6 + $0x28] sm:$0xff]
    %v368 = vld [vmem:[%s6 + $0x30] sm:$0xff]
    %v369 = vld [vmem:[%s6 + $0x38] sm:$0xff]
    %v370 = vld [vmem:[%s6 + $0x40] sm:$0xff]
    %v371 = vld [vmem:[%s6 + $0x48] sm:$0xff]
    %v372 = vld [vmem:[%s6 + $0x50] sm:$0xff]
    %v373 = vld [vmem:[%s6 + $0x58] sm:$0xff]
    %v374 = vld [vmem:[%s6 + $0x60] sm:$0xff]
    %v375 = vld [vmem:[%s6 + $0x68] sm:$0xff]
    %v376 = vld [vmem:[%s6 + $0x70] sm:$0xff]
    %v377 = vld [vmem:[%s6 + $0x78] sm:$0xff]
    %379 = vset.pattern.permute.xlu0 0
    %380 = vperm.xlu0 %379, %v362
    %v381 = vpop.permute.xlu0 %380
    %384 = vset.pattern.permute.xlu0 0
    %385 = vperm.xlu0 %384, %v363
    %v386 = vpop.permute.xlu0 %385
    %389 = vset.pattern.permute.xlu0 0
    %390 = vperm.xlu0 %389, %v364
    %v391 = vpop.permute.xlu0 %390
    %394 = vset.pattern.permute.xlu0 0
    %395 = vperm.xlu0 %394, %v365
    %v396 = vpop.permute.xlu0 %395
    %399 = vset.pattern.permute.xlu0 0
    %400 = vperm.xlu0 %399, %v366
    %v401 = vpop.permute.xlu0 %400
    %404 = vset.pattern.permute.xlu0 0
    %405 = vperm.xlu0 %404, %v367
    %v406 = vpop.permute.xlu0 %405
    %409 = vset.pattern.permute.xlu0 0
    %410 = vperm.xlu0 %409, %v368
    %v411 = vpop.permute.xlu0 %410
    %414 = vset.pattern.permute.xlu0 0
    %415 = vperm.xlu0 %414, %v369
    %v416 = vpop.permute.xlu0 %415
    %419 = vset.pattern.permute.xlu0 0
    %420 = vperm.xlu0 %419, %v370
    %v421 = vpop.permute.xlu0 %420
    %424 = vset.pattern.permute.xlu0 0
    %425 = vperm.xlu0 %424, %v371
    %v426 = vpop.permute.xlu0 %425
    %429 = vset.pattern.permute.xlu0 0
    %430 = vperm.xlu0 %429, %v372
    %v431 = vpop.permute.xlu0 %430
    %434 = vset.pattern.permute.xlu0 0
    %435 = vperm.xlu0 %434, %v373
    %v436 = vpop.permute.xlu0 %435
    %439 = vset.pattern.permute.xlu0 0
    %440 = vperm.xlu0 %439, %v374
    %v441 = vpop.permute.xlu0 %440
    %444 = vset.pattern.permute.xlu0 0
    %445 = vperm.xlu0 %444, %v375
    %v446 = vpop.permute.xlu0 %445
    %449 = vset.pattern.permute.xlu0 0
    %450 = vperm.xlu0 %449, %v376
    %v451 = vpop.permute.xlu0 %450
    %454 = vset.pattern.permute.xlu0 0
    %455 = vperm.xlu0 %454, %v377
    %v456 = vpop.permute.xlu0 %455
    %v458 = vmul.f32 %v381, %v78
    %v459 = vmul.f32 %v386, %v79
    %v460 = vmul.f32 %v391, %v80
    %v461 = vmul.f32 %v396, %v81
    %v462 = vmul.f32 %v401, %v82
    %v463 = vmul.f32 %v406, %v83
    %v464 = vmul.f32 %v411, %v84
    %v465 = vmul.f32 %v416, %v85
    %v466 = vmul.f32 %v421, %v86
    %v467 = vmul.f32 %v426, %v87
    %v468 = vmul.f32 %v431, %v88
    %v469 = vmul.f32 %v436, %v89
    %v470 = vmul.f32 %v441, %v90
    %v471 = vmul.f32 %v446, %v91
    %v472 = vmul.f32 %v451, %v92
    %v473 = vmul.f32 %v456, %v93
    %474 = vmatpush.msra.mxu0 %v473
    %475 = vmatpush.msra.mxu0 %v472
    %476 = vmatpush.msra.mxu0 %v471
    %477 = vmatpush.msra.mxu0 %v470
    %478 = vmatpush.msra.mxu0 %v469
    %479 = vmatpush.msra.mxu0 %v468
    %480 = vmatpush.msra.mxu0 %v467
    %481 = vmatpush.msra.mxu0 %v466
    %482 = vmatpush.msra.mxu0 %v465
    %483 = vmatpush.msra.mxu0 %v464
    %484 = vmatpush.msra.mxu0 %v463
    %485 = vmatpush.msra.mxu0 %v462
    %486 = vmatpush.msra.mxu0 %v461
    %487 = vmatpush.msra.mxu0 %v460
    %488 = vmatpush.msra.mxu0 %v459
    %489 = vmatpush.msra.mxu0 %v458
    %490 = vmatmul.f32.gmra.mxu0 %v330
    %v491 = vpop.f32.mrf.mxu0
    %v492 = vadd.f32 0.0, %v491
    %493 = vmatmul.f32.gmra.mxu0 %v331
    %v494 = vpop.f32.mrf.mxu0
    %v495 = vadd.f32 0.0, %v494
    %496 = vmatmul.f32.gmra.mxu0 %v332
    %v497 = vpop.f32.mrf.mxu0
    %v498 = vadd.f32 0.0, %v497
    %499 = vmatmul.f32.gmra.mxu0 %v333
    %v500 = vpop.f32.mrf.mxu0
    %v501 = vadd.f32 0.0, %v500
    %502 = vmatmul.f32.gmra.mxu0 %v334
    %v503 = vpop.f32.mrf.mxu0
    %v504 = vadd.f32 0.0, %v503
    %505 = vmatmul.f32.gmra.mxu0 %v335
    %v506 = vpop.f32.mrf.mxu0
    %v507 = vadd.f32 0.0, %v506
    %508 = vmatmul.f32.gmra.mxu0 %v336
    %v509 = vpop.f32.mrf.mxu0
    %v510 = vadd.f32 0.0, %v509
    %511 = vmatmul.f32.gmra.mxu0 %v337
    %v512 = vpop.f32.mrf.mxu0
    %v513 = vadd.f32 0.0, %v512
    %514 = vmatmul.f32.gmra.mxu0 %v338
    %v515 = vpop.f32.mrf.mxu0
    %v516 = vadd.f32 0.0, %v515
    %517 = vmatmul.f32.gmra.mxu0 %v339
    %v518 = vpop.f32.mrf.mxu0
    %v519 = vadd.f32 0.0, %v518
    %520 = vmatmul.f32.gmra.mxu0 %v340
    %v521 = vpop.f32.mrf.mxu0
    %v522 = vadd.f32 0.0, %v521
    %523 = vmatmul.f32.gmra.mxu0 %v341
    %v524 = vpop.f32.mrf.mxu0
    %v525 = vadd.f32 0.0, %v524
    %526 = vmatmul.f32.gmra.mxu0 %v342
    %v527 = vpop.f32.mrf.mxu0
    %v528 = vadd.f32 0.0, %v527
    %529 = vmatmul.f32.gmra.mxu0 %v343
    %v530 = vpop.f32.mrf.mxu0
    %v531 = vadd.f32 0.0, %v530
    %532 = vmatmul.f32.gmra.mxu0 %v344
    %v533 = vpop.f32.mrf.mxu0
    %v534 = vadd.f32 0.0, %v533
    %535 = vmatmul.f32.gmra.mxu0 %v345
    %v536 = vpop.f32.mrf.mxu0
    %v537 = vadd.f32 0.0, %v536
    %538 = vdwg.mxu0
    %v539 = vadd.f32 %v346, %v492
    %v540 = vadd.f32 %v347, %v495
    %v541 = vadd.f32 %v348, %v498
    %v542 = vadd.f32 %v349, %v501
    %v543 = vadd.f32 %v350, %v504
    %v544 = vadd.f32 %v351, %v507
    %v545 = vadd.f32 %v352, %v510
    %v546 = vadd.f32 %v353, %v513
    %v547 = vadd.f32 %v354, %v516
    %v548 = vadd.f32 %v355, %v519
    %v549 = vadd.f32 %v356, %v522
    %v550 = vadd.f32 %v357, %v525
    %v551 = vadd.f32 %v358, %v528
    %v552 = vadd.f32 %v359, %v531
    %v553 = vadd.f32 %v360, %v534
    %v554 = vadd.f32 %v361, %v537
    %555 = vst.msk [vmem:[#allocation2] sm:$0xff] %vm114, %v539
    %556 = vst.msk [vmem:[#allocation2 + $0x8] sm:$0xff] %vm114, %v540
    %557 = vst.msk [vmem:[#allocation2 + $0x10] sm:$0xff] %vm114, %v541
    %558 = vst.msk [vmem:[#allocation2 + $0x18] sm:$0xff] %vm114, %v542
    %559 = vst.msk [vmem:[#allocation2 + $0x20] sm:$0xff] %vm114, %v543
    %560 = vst.msk [vmem:[#allocation2 + $0x28] sm:$0xff] %vm114, %v544
    %561 = vst.msk [vmem:[#allocation2 + $0x30] sm:$0xff] %vm114, %v545
    %562 = vst.msk [vmem:[#allocation2 + $0x38] sm:$0xff] %vm114, %v546
    %563 = vst.msk [vmem:[#allocation2 + $0x40] sm:$0xff] %vm114, %v547
    %564 = vst.msk [vmem:[#allocation2 + $0x48] sm:$0xff] %vm114, %v548
    %565 = vst.msk [vmem:[#allocation2 + $0x50] sm:$0xff] %vm114, %v549
    %566 = vst.msk [vmem:[#allocation2 + $0x58] sm:$0xff] %vm114, %v550
    %567 = vst.msk [vmem:[#allocation2 + $0x60] sm:$0xff] %vm114, %v551
    %568 = vst.msk [vmem:[#allocation2 + $0x68] sm:$0xff] %vm114, %v552
    %569 = vst.msk [vmem:[#allocation2 + $0x70] sm:$0xff] %vm114, %v553
    %570 = vst.msk [vmem:[#allocation2 + $0x78] sm:$0xff] %vm114, %v554
  $region45: #{fagcn_forward.5} parent=0 // pred_fallthru
    _
  // Predicated region
  $region46: #{fagcn_forward.5} parent=0 // pred_check
    %p571 = pneg %p35
  $region47: #{fagcn_forward.5} parent=0 // pred_check_branch
    %573 = sbr.rel (%p571) target = $region49
  $region48: #{fagcn_forward.5} parent=0 // pred_region
    %v574 = vld [vmem:[%s4] sm:$0xff]
    %v575 = vld [vmem:[%s4 + $0x8] sm:$0xff]
    %v576 = vld [vmem:[%s4 + $0x10] sm:$0xff]
    %v577 = vld [vmem:[%s4 + $0x18] sm:$0xff]
    %v578 = vld [vmem:[%s4 + $0x20] sm:$0xff]
    %v579 = vld [vmem:[%s4 + $0x28] sm:$0xff]
    %v580 = vld [vmem:[%s4 + $0x30] sm:$0xff]
    %v581 = vld [vmem:[%s4 + $0x38] sm:$0xff]
    %v582 = vld [vmem:[%s4 + $0x40] sm:$0xff]
    %v583 = vld [vmem:[%s4 + $0x48] sm:$0xff]
    %v584 = vld [vmem:[%s4 + $0x50] sm:$0xff]
    %v585 = vld [vmem:[%s4 + $0x58] sm:$0xff]
    %v586 = vld [vmem:[%s4 + $0x60] sm:$0xff]
    %v587 = vld [vmem:[%s4 + $0x68] sm:$0xff]
    %v588 = vld [vmem:[%s4 + $0x70] sm:$0xff]
    %v589 = vld [vmem:[%s4 + $0x78] sm:$0xff]
    %v590 = vmul.f32 %v574, 0.3
    %v591 = vmul.f32 %v575, 0.3
    %v592 = vmul.f32 %v576, 0.3
    %v593 = vmul.f32 %v577, 0.3
    %v594 = vmul.f32 %v578, 0.3
    %v595 = vmul.f32 %v579, 0.3
    %v596 = vmul.f32 %v580, 0.3
    %v597 = vmul.f32 %v581, 0.3
    %v598 = vmul.f32 %v582, 0.3
    %v599 = vmul.f32 %v583, 0.3
    %v600 = vmul.f32 %v584, 0.3
    %v601 = vmul.f32 %v585, 0.3
    %v602 = vmul.f32 %v586, 0.3
    %v603 = vmul.f32 %v587, 0.3
    %v604 = vmul.f32 %v588, 0.3
    %v605 = vmul.f32 %v589, 0.3
    %v606 = vld [vmem:[%s5] sm:$0xff]
    %v607 = vld [vmem:[%s5 + $0x8] sm:$0xff]
    %v608 = vld [vmem:[%s5 + $0x10] sm:$0xff]
    %v609 = vld [vmem:[%s5 + $0x18] sm:$0xff]
    %v610 = vld [vmem:[%s5 + $0x20] sm:$0xff]
    %v611 = vld [vmem:[%s5 + $0x28] sm:$0xff]
    %v612 = vld [vmem:[%s5 + $0x30] sm:$0xff]
    %v613 = vld [vmem:[%s5 + $0x38] sm:$0xff]
    %v614 = vld [vmem:[%s5 + $0x40] sm:$0xff]
    %v615 = vld [vmem:[%s5 + $0x48] sm:$0xff]
    %v616 = vld [vmem:[%s5 + $0x50] sm:$0xff]
    %v617 = vld [vmem:[%s5 + $0x58] sm:$0xff]
    %v618 = vld [vmem:[%s5 + $0x60] sm:$0xff]
    %v619 = vld [vmem:[%s5 + $0x68] sm:$0xff]
    %v620 = vld [vmem:[%s5 + $0x70] sm:$0xff]
    %v621 = vld [vmem:[%s5 + $0x78] sm:$0xff]
    %v622 = vld [vmem:[#allocation2] sm:$0xff]
    %v623 = vld [vmem:[#allocation2 + $0x8] sm:$0xff]
    %v624 = vld [vmem:[#allocation2 + $0x10] sm:$0xff]
    %v625 = vld [vmem:[#allocation2 + $0x18] sm:$0xff]
    %v626 = vld [vmem:[#allocation2 + $0x20] sm:$0xff]
    %v627 = vld [vmem:[#allocation2 + $0x28] sm:$0xff]
    %v628 = vld [vmem:[#allocation2 + $0x30] sm:$0xff]
    %v629 = vld [vmem:[#allocation2 + $0x38] sm:$0xff]
    %v630 = vld [vmem:[#allocation2 + $0x40] sm:$0xff]
    %v631 = vld [vmem:[#allocation2 + $0x48] sm:$0xff]
    %v632 = vld [vmem:[#allocation2 + $0x50] sm:$0xff]
    %v633 = vld [vmem:[#allocation2 + $0x58] sm:$0xff]
    %v634 = vld [vmem:[#allocation2 + $0x60] sm:$0xff]
    %v635 = vld [vmem:[#allocation2 + $0x68] sm:$0xff]
    %v636 = vld [vmem:[#allocation2 + $0x70] sm:$0xff]
    %v637 = vld [vmem:[#allocation2 + $0x78] sm:$0xff]
    %639 = vset.pattern.permute.xlu0 0
    %640 = vperm.xlu0 %639, %v606
    %v641 = vpop.permute.xlu0 %640
    %644 = vset.pattern.permute.xlu0 0
    %645 = vperm.xlu0 %644, %v607
    %v646 = vpop.permute.xlu0 %645
    %649 = vset.pattern.permute.xlu0 0
    %650 = vperm.xlu0 %649, %v608
    %v651 = vpop.permute.xlu0 %650
    %654 = vset.pattern.permute.xlu0 0
    %655 = vperm.xlu0 %654, %v609
    %v656 = vpop.permute.xlu0 %655
    %659 = vset.pattern.permute.xlu0 0
    %660 = vperm.xlu0 %659, %v610
    %v661 = vpop.permute.xlu0 %660
    %664 = vset.pattern.permute.xlu0 0
    %665 = vperm.xlu0 %664, %v611
    %v666 = vpop.permute.xlu0 %665
    %669 = vset.pattern.permute.xlu0 0
    %670 = vperm.xlu0 %669, %v612
    %v671 = vpop.permute.xlu0 %670
    %674 = vset.pattern.permute.xlu0 0
    %675 = vperm.xlu0 %674, %v613
    %v676 = vpop.permute.xlu0 %675
    %679 = vset.pattern.permute.xlu0 0
    %680 = vperm.xlu0 %679, %v614
    %v681 = vpop.permute.xlu0 %680
    %684 = vset.pattern.permute.xlu0 0
    %685 = vperm.xlu0 %684, %v615
    %v686 = vpop.permute.xlu0 %685
    %689 = vset.pattern.permute.xlu0 0
    %690 = vperm.xlu0 %689, %v616
    %v691 = vpop.permute.xlu0 %690
    %694 = vset.pattern.permute.xlu0 0
    %695 = vperm.xlu0 %694, %v617
    %v696 = vpop.permute.xlu0 %695
    %699 = vset.pattern.permute.xlu0 0
    %700 = vperm.xlu0 %699, %v618
    %v701 = vpop.permute.xlu0 %700
    %704 = vset.pattern.permute.xlu0 0
    %705 = vperm.xlu0 %704, %v619
    %v706 = vpop.permute.xlu0 %705
    %709 = vset.pattern.permute.xlu0 0
    %710 = vperm.xlu0 %709, %v620
    %v711 = vpop.permute.xlu0 %710
    %714 = vset.pattern.permute.xlu0 0
    %715 = vperm.xlu0 %714, %v621
    %v716 = vpop.permute.xlu0 %715
    %v718 = vmul.f32 %v641, %v622
    %v719 = vmul.f32 %v646, %v623
    %v720 = vmul.f32 %v651, %v624
    %v721 = vmul.f32 %v656, %v625
    %v722 = vmul.f32 %v661, %v626
    %v723 = vmul.f32 %v666, %v627
    %v724 = vmul.f32 %v671, %v628
    %v725 = vmul.f32 %v676, %v629
    %v726 = vmul.f32 %v681, %v630
    %v727 = vmul.f32 %v686, %v631
    %v728 = vmul.f32 %v691, %v632
    %v729 = vmul.f32 %v696, %v633
    %v730 = vmul.f32 %v701, %v634
    %v731 = vmul.f32 %v706, %v635
    %v732 = vmul.f32 %v711, %v636
    %v733 = vmul.f32 %v716, %v637
    %v734 = vadd.f32 %v590, %v718
    %v735 = vadd.f32 %v591, %v719
    %v736 = vadd.f32 %v592, %v720
    %v737 = vadd.f32 %v593, %v721
    %v738 = vadd.f32 %v594, %v722
    %v739 = vadd.f32 %v595, %v723
    %v740 = vadd.f32 %v596, %v724
    %v741 = vadd.f32 %v597, %v725
    %v742 = vadd.f32 %v598, %v726
    %v743 = vadd.f32 %v599, %v727
    %v744 = vadd.f32 %v600, %v728
    %v745 = vadd.f32 %v601, %v729
    %v746 = vadd.f32 %v602, %v730
    %v747 = vadd.f32 %v603, %v731
    %v748 = vadd.f32 %v604, %v732
    %v749 = vadd.f32 %v605, %v733
    %vm750 = vcmask 261120
    %751 = vst.msk [vmem:[%s10] sm:$0xff] %vm750, %v734
    %752 = vst.msk [vmem:[%s10 + $0x8] sm:$0xff] %vm750, %v735
    %753 = vst.msk [vmem:[%s10 + $0x10] sm:$0xff] %vm750, %v736
    %754 = vst.msk [vmem:[%s10 + $0x18] sm:$0xff] %vm750, %v737
    %755 = vst.msk [vmem:[%s10 + $0x20] sm:$0xff] %vm750, %v738
    %756 = vst.msk [vmem:[%s10 + $0x28] sm:$0xff] %vm750, %v739
    %757 = vst.msk [vmem:[%s10 + $0x30] sm:$0xff] %vm750, %v740
    %758 = vst.msk [vmem:[%s10 + $0x38] sm:$0xff] %vm750, %v741
    %759 = vst.msk [vmem:[%s10 + $0x40] sm:$0xff] %vm750, %v742
    %760 = vst.msk [vmem:[%s10 + $0x48] sm:$0xff] %vm750, %v743
    %761 = vst.msk [vmem:[%s10 + $0x50] sm:$0xff] %vm750, %v744
    %762 = vst.msk [vmem:[%s10 + $0x58] sm:$0xff] %vm750, %v745
    %763 = vst.msk [vmem:[%s10 + $0x60] sm:$0xff] %vm750, %v746
    %764 = vst.msk [vmem:[%s10 + $0x68] sm:$0xff] %vm750, %v747
    %765 = vst.msk [vmem:[%s10 + $0x70] sm:$0xff] %vm750, %v748
    %766 = vst.msk [vmem:[%s10 + $0x78] sm:$0xff] %vm750, %v749
  $region49: #{fagcn_forward.5} parent=0 // pred_fallthru
    _
  // Predicated region
  $region50: #{fagcn_forward.5} parent=0 // pred_check
    _
  $region51: #{fagcn_forward.5} parent=0 // pred_check_branch
    %768 = sbr.rel (0) target = $region53
  $region52: #{fagcn_forward.5} parent=0 // pred_region
    _
  $region53: #{fagcn_forward.5} parent=0 // pred_fallthru
    _
  // Predicated region
  $region54: #{fagcn_forward.5} parent=0 // pred_check
    _
  $region55: #{fagcn_forward.5} parent=0 // pred_check_branch
    %770 = sbr.rel (0) target = $region57
  $region56: #{fagcn_forward.5} parent=0 // pred_region
    _
  $region57: #{fagcn_forward.5} parent=0 // pred_fallthru
    _

</llo_original>
